<compile_context>
chip_gen: v6e
topology: v6e:2x2x1
jax: 0.10.0
libtpu: 0.0.40
codegen_flags: <defaults>
</compile_context>

<pallas_src>
import functools

import jax
import jax.numpy as jnp
from jax import lax
from jax.experimental import pallas as pl
from jax.experimental.pallas import tpu as pltpu

EPS = 1e-5  # PyTorch InstanceNorm2d default eps


# ------------------------- fused Pallas kernel -------------------------

def _film2f_kernel(patch_ref, w2_ref, p_ref, wf_ref, bf_ref, inp_ref, o_ref):
    # patch_ref: (bb, 9*C, HW)   w2_ref: (C, 9*C)   p_ref: (C, 3) = [in_w, in_b, prelu_a]
    # wf_ref:   (HW, 2*HF)       bf_ref: (1, 2*HF)  inp_ref/o_ref: (bb, C, HF), HF = H_out*F
    # bb is 1 (grid over batch, dual-core chips) or B (batch folded, single-core chips).
    bb = patch_ref.shape[0]
    hf = inp_ref.shape[2]
    for b in range(bb):  # static, tiny (<= B)
        # Conv (3x3, stride (1,2)) as a matmul with output channels on sublanes -> (C, HW).
        # (conv bias omitted: exactly cancelled by InstanceNorm's mean subtraction)
        y = jnp.dot(w2_ref[...], patch_ref[b], preferred_element_type=jnp.float32)

        # InstanceNorm2d: per-(batch, channel) stats over the HW lane axis (two-pass var).
        mu = jnp.mean(y, axis=1, keepdims=True)
        d = y - mu
        var = jnp.mean(d * d, axis=1, keepdims=True)
        y = d * lax.rsqrt(var + EPS)
        y = y * p_ref[:, 0:1] + p_ref[:, 1:2]               # InstanceNorm affine

        # PReLU(64): per-channel slope.
        y = jnp.where(y >= 0.0, y, p_ref[:, 2:3] * y)

        # gamma|beta via ONE block-diagonal matmul: (C, HW) @ (HW, 2*HF) -> lane-dense (C, 128).
        gb = jnp.dot(y, wf_ref[...], preferred_element_type=jnp.float32) + bf_ref[...]
        o_ref[b] = inp_ref[b] * gb[:, :hf] + gb[:, hf:]


# ------------------------- one-time parameter packing -------------------------

def prepare_params(params, H_out):
    """Run once per weight set (NOT per forward call)."""
    C = params["conv_w"].shape[0]

    # conv weight (Cout,Cin,kh,kw) -> (Cout, kh, kw, Cin) -> (C, 9*C), matching patch ordering.
    w2 = params["conv_w"].transpose(0, 2, 3, 1).reshape(C, 9 * C).astype(jnp.float32)

    # Per-channel vectors packed into one (C, 3) array (one DMA instead of three).
    # conv_b intentionally dropped: InstanceNorm's per-(b,c) mean subtraction cancels it.
    pvec = jnp.stack([params["in_w"], params["in_b"], params["prelu_a"]],
                     axis=1).astype(jnp.float32)

    # gamma/beta Linears fused into one block-diagonal weight producing a lane-dense
    # (C, 2*HF) result per batch:
    #   Wf[h*W_out + w, h*F + f]      = g_w[f, w]
    #   Wf[h*W_out + w, HF + h*F + f] = b_w[f, w]
    eyeH = jnp.eye(H_out, dtype=jnp.float32)
    Wf = jnp.concatenate([jnp.kron(eyeH, params["g_w"].T.astype(jnp.float32)),
                          jnp.kron(eyeH, params["b_w"].T.astype(jnp.float32))], axis=1)
    bf = jnp.concatenate([jnp.tile(params["g_b"], H_out),
                          jnp.tile(params["b_b"], H_out)])[None, :].astype(jnp.float32)

    return {"w2": w2, "pvec": pvec, "Wf": Wf, "bf": bf}


# ------------------------- forward (jitted) -------------------------

def _single_core_chip():
    """True on single-TensorCore chips (v5e/v6e): fold B. False on dual-core v7x."""
    try:
        kind = jax.devices()[0].device_kind.lower()
    except Exception:
        return True
    return "7" not in kind


@functools.partial(jax.jit, static_argnames=("fold_batch",))
def film2f_forward(inp, ctx, prepared, fold_batch=True):
    B, C, Hc, Wc = ctx.shape
    H_out = Hc - 2                      # kernel 3, no height padding
    W_out = (Wc - 1) // 2 + 1           # width pad 1 each side, stride 2
    HW = H_out * W_out

    Bi, Ci, Hi, F = inp.shape
    assert (Bi, Ci, Hi) == (B, C, H_out), "input / context shapes inconsistent with FiLM2F"
    HF = H_out * F

    # TODO(synk): RefConv's definition is not in the provided source; assumed to be
    # ReflectionPad (width=1 only) + Conv2d(64, 64, 3, stride=(1, 2), padding=0, bias=True).
    xpad = jnp.pad(ctx, ((0, 0), (0, 0), (0, 0), (1, 1)), mode="reflect")

    # im2col with the tap axis adjacent to C (stack + reshape only; fuses under jit).
    #   patch[b, (kh*3+kw)*C + ci, h*W_out + w] = xpad[b, ci, h+kh, 2*w+kw]
    cols = [xpad[:, :, kh:kh + H_out, kw:kw + 2 * W_out:2]
            for kh in range(3) for kw in range(3)]                       # each (B,C,H_out,W_out)
    patch = jnp.stack(cols, axis=1).reshape(B, 9 * C, HW).astype(jnp.float32)

    inp3 = inp.reshape(B, C, HF).astype(jnp.float32)                     # pure reshape

    bb = B if fold_batch else 1          # batch block: fold on single-core, split on v7x
    grid = (B // bb,)

    flops = 2 * B * (C * 9 * C * HW + C * HW * 2 * HF)
    bytes_accessed = 4 * (patch.size + prepared["w2"].size + prepared["pvec"].size
                          + prepared["Wf"].size + prepared["bf"].size + 2 * inp3.size)

    out3 = pl.pallas_call(
        _film2f_kernel,
        out_shape=jax.ShapeDtypeStruct((B, C, HF), jnp.float32),
        grid=grid,
        in_specs=[
            pl.BlockSpec((bb, 9 * C, HW), lambda i: (i, 0, 0)),   # im2col patches
            pl.BlockSpec((C, 9 * C), lambda i: (0, 0)),           # conv weight
            pl.BlockSpec((C, 3), lambda i: (0, 0)),               # packed per-channel params
            pl.BlockSpec((HW, 2 * HF), lambda i: (0, 0)),         # fused FiLM weights
            pl.BlockSpec((1, 2 * HF), lambda i: (0, 0)),          # fused FiLM bias
            pl.BlockSpec((bb, C, HF), lambda i: (i, 0, 0)),       # modulated input
        ],
        out_specs=pl.BlockSpec((bb, C, HF), lambda i: (i, 0, 0)),
        compiler_params=pltpu.CompilerParams(dimension_semantics=("parallel",)),
        cost_estimate=pl.CostEstimate(flops=flops, transcendentals=B * C,
                                      bytes_accessed=bytes_accessed),
    )(patch, prepared["w2"], prepared["pvec"], prepared["Wf"], prepared["bf"], inp3)

    return out3.reshape(inp.shape)


# ------------------------- pure-JAX reference -------------------------

def film2f_reference(inp, ctx, params):
    xpad = jnp.pad(ctx, ((0, 0), (0, 0), (0, 0), (1, 1)), mode="reflect")
    y = lax.conv_general_dilated(
        xpad, params["conv_w"], window_strides=(1, 2), padding="VALID",
        dimension_numbers=("NCHW", "OIHW", "NCHW"),
        precision=lax.Precision.HIGHEST)
    y = y + params["conv_b"][None, :, None, None]
    mu = y.mean(axis=(2, 3), keepdims=True)
    var = ((y - mu) ** 2).mean(axis=(2, 3), keepdims=True)
    y = (y - mu) / jnp.sqrt(var + EPS)
    y = y * params["in_w"][None, :, None, None] + params["in_b"][None, :, None, None]
    y = jnp.where(y >= 0.0, y, params["prelu_a"][None, :, None, None] * y)
    cf = y.reshape(-1, y.shape[3])
    g = jnp.dot(cf, params["g_w"].T, precision=lax.Precision.HIGHEST) + params["g_b"]
    b = jnp.dot(cf, params["b_w"].T, precision=lax.Precision.HIGHEST) + params["b_b"]
    return inp * g.reshape(inp.shape) + b.reshape(inp.shape)


# ------------------------- main -------------------------

if __name__ == "__main__":
    C = 64                      # fixed by conv_2 = RefConv(64, 64, ...)
    B, Hc, Wc = 2, 6, 16        # context spatial dims
    H_out = Hc - 2              # 4
    W_out = (Wc - 1) // 2 + 1   # 8  -> Linear input_size
    F = 16                      # feature_size -> input's last dim

    key = jax.random.PRNGKey(0)
    ks = jax.random.split(key, 10)

    params = {
        "conv_w": jax.random.normal(ks[0], (C, C, 3, 3), jnp.float32) / (3.0 * jnp.sqrt(float(C))),
        "conv_b": 0.05 * jax.random.normal(ks[1], (C,), jnp.float32),
        "in_w": 1.0 + 0.1 * jax.random.normal(ks[2], (C,), jnp.float32),
        "in_b": 0.1 * jax.random.normal(ks[3], (C,), jnp.float32),
        "prelu_a": jnp.full((C,), 0.25, jnp.float32),
        "g_w": jax.random.normal(ks[4], (F, W_out), jnp.float32) / jnp.sqrt(float(W_out)),
        "g_b": 0.1 * jax.random.normal(ks[5], (F,), jnp.float32),
        "b_w": jax.random.normal(ks[6], (F, W_out), jnp.float32) / jnp.sqrt(float(W_out)),
        "b_b": 0.1 * jax.random.normal(ks[7], (F,), jnp.float32),
    }

    # input such that (B*C*H_out, F) reshapes back to input.shape, as in the module
    inp = jax.random.normal(ks[8], (B, C, H_out, F), jnp.float32)
    ctx = jax.random.normal(ks[9], (B, C, Hc, Wc), jnp.float32)

    prepared = prepare_params(params, H_out)          # one-time, per weight set
    fold_batch = _single_core_chip()                  # v5e/v6e: fold B; v7x: grid=(B,) parallel

    out = film2f_forward(inp, ctx, prepared, fold_batch=fold_batch)
    out = jax.block_until_ready(out)

    ref = jax.block_until_ready(film2f_reference(inp, ctx, params))
    assert out.shape == inp.shape
    assert jnp.allclose(out, ref, atol=2e-2, rtol=2e-2), \
        f"max abs err {float(jnp.max(jnp.abs(out - ref)))}"

    print("KERNEL_OK")
</pallas_src>

<mosaic_0001>
module attributes {stable_mosaic.version = 11 : i64} {
  func.func @_film2f_kernel(%arg0: i32, %arg1: memref<2x576x32xf32, #tpu.memory_space<vmem>>, %arg2: memref<64x576xf32, #tpu.memory_space<vmem>>, %arg3: memref<64x3xf32, #tpu.memory_space<vmem>>, %arg4: memref<32x128xf32, #tpu.memory_space<vmem>>, %arg5: memref<1x128xf32, #tpu.memory_space<vmem>>, %arg6: memref<2x64x64xf32, #tpu.memory_space<vmem>>, %arg7: memref<2x64x64xf32, #tpu.memory_space<vmem>>) attributes {dimension_semantics = [#tpu.dimension_semantics<parallel>], iteration_bounds = array<i64: 1>, scalar_prefetch = 0 : i64, scratch_operands = 0 : i64, tpu.core_type = #tpu.core_type<tc>, window_params = [{transform_indices = @transform_0, window_bounds = array<i64: 2, 576, 32>}, {pipeline_mode = #tpu.pipeline_mode<synchronous>, transform_indices = @transform_1, window_bounds = array<i64: 64, 576>}, {pipeline_mode = #tpu.pipeline_mode<synchronous>, transform_indices = @transform_2, window_bounds = array<i64: 64, 3>}, {pipeline_mode = #tpu.pipeline_mode<synchronous>, transform_indices = @transform_3, window_bounds = array<i64: 32, 128>}, {pipeline_mode = #tpu.pipeline_mode<synchronous>, transform_indices = @transform_4, window_bounds = array<i64: 1, 128>}, {transform_indices = @transform_5, window_bounds = array<i64: 2, 64, 64>}, {transform_indices = @transform_6, window_bounds = array<i64: 2, 64, 64>}]} {
    %c0 = arith.constant 0 : index
    %c0_0 = arith.constant 0 : index
    %0 = vector.load %arg2[%c0, %c0_0] : memref<64x576xf32, #tpu.memory_space<vmem>>, vector<64x576xf32>
    %c0_1 = arith.constant 0 : index
    %c0_2 = arith.constant 0 : index
    %c0_3 = arith.constant 0 : index
    %1 = vector.load %arg1[%c0_1, %c0_2, %c0_3] : memref<2x576x32xf32, #tpu.memory_space<vmem>>, vector<1x576x32xf32>
    %2 = vector.shape_cast %1 : vector<1x576x32xf32> to vector<576x32xf32>
    %cst = arith.constant dense<0.000000e+00> : vector<64x32xf32>
    %3 = tpu.matmul %0, %2, %cst {dimension_numbers = #tpu.dot_dimension_numbers<[1], [0], [0], [1], [0, 0, 1, 1], [], []>} : vector<64x576xf32>, vector<576x32xf32>, vector<64x32xf32> -> vector<64x32xf32>
    %cst_4 = arith.constant dense<0.000000e+00> : vector<64xf32>
    %4 = vector.multi_reduction <add>, %3, %cst_4 [1] : vector<64x32xf32> to vector<64xf32>
    %5 = vector.shape_cast %4 : vector<64xf32> to vector<64x1xf32>
    %cst_5 = arith.constant 3.200000e+01 : f32
    %6 = vector.broadcast %cst_5 : f32 to vector<64x1xf32>
    %7 = arith.divf %5, %6 : vector<64x1xf32>
    %8 = vector.broadcast %7 : vector<64x1xf32> to vector<64x32xf32>
    %9 = arith.subf %3, %8 : vector<64x32xf32>
    %10 = arith.mulf %9, %9 : vector<64x32xf32>
    %cst_6 = arith.constant dense<0.000000e+00> : vector<64xf32>
    %11 = vector.multi_reduction <add>, %10, %cst_6 [1] : vector<64x32xf32> to vector<64xf32>
    %12 = vector.shape_cast %11 : vector<64xf32> to vector<64x1xf32>
    %cst_7 = arith.constant 3.200000e+01 : f32
    %13 = vector.broadcast %cst_7 : f32 to vector<64x1xf32>
    %14 = arith.divf %12, %13 : vector<64x1xf32>
    %cst_8 = arith.constant 9.99999974E-6 : f32
    %15 = vector.broadcast %cst_8 : f32 to vector<64x1xf32>
    %16 = arith.addf %14, %15 : vector<64x1xf32>
    %17 = math.rsqrt %16 : vector<64x1xf32>
    %18 = vector.broadcast %17 : vector<64x1xf32> to vector<64x32xf32>
    %19 = arith.mulf %9, %18 : vector<64x32xf32>
    %c0_9 = arith.constant 0 : index
    %c0_10 = arith.constant 0 : index
    %20 = vector.load %arg3[%c0_9, %c0_10] : memref<64x3xf32, #tpu.memory_space<vmem>>, vector<64x1xf32>
    %21 = vector.broadcast %20 : vector<64x1xf32> to vector<64x32xf32>
    %22 = arith.mulf %19, %21 : vector<64x32xf32>
    %c0_11 = arith.constant 0 : index
    %c1 = arith.constant 1 : index
    %23 = vector.load %arg3[%c0_11, %c1] : memref<64x3xf32, #tpu.memory_space<vmem>>, vector<64x1xf32>
    %24 = vector.broadcast %23 : vector<64x1xf32> to vector<64x32xf32>
    %25 = arith.addf %22, %24 : vector<64x32xf32>
    %cst_12 = arith.constant 0.000000e+00 : f32
    %26 = vector.broadcast %cst_12 : f32 to vector<64x32xf32>
    %27 = arith.cmpf oge, %25, %26 : vector<64x32xf32>
    %c0_13 = arith.constant 0 : index
    %c2 = arith.constant 2 : index
    %28 = vector.load %arg3[%c0_13, %c2] : memref<64x3xf32, #tpu.memory_space<vmem>>, vector<64x1xf32>
    %29 = vector.broadcast %28 : vector<64x1xf32> to vector<64x32xf32>
    %30 = arith.mulf %29, %25 : vector<64x32xf32>
    %31 = arith.select %27, %25, %30 : vector<64x32xi1>, vector<64x32xf32>
    %c0_14 = arith.constant 0 : index
    %c0_15 = arith.constant 0 : index
    %32 = vector.load %arg4[%c0_14, %c0_15] : memref<32x128xf32, #tpu.memory_space<vmem>>, vector<32x128xf32>
    %cst_16 = arith.constant dense<0.000000e+00> : vector<64x128xf32>
    %33 = tpu.matmul %31, %32, %cst_16 {dimension_numbers = #tpu.dot_dimension_numbers<[1], [0], [0], [1], [0, 0, 1, 1], [], []>} : vector<64x32xf32>, vector<32x128xf32>, vector<64x128xf32> -> vector<64x128xf32>
    %c0_17 = arith.constant 0 : index
    %c0_18 = arith.constant 0 : index
    %34 = vector.load %arg5[%c0_17, %c0_18] : memref<1x128xf32, #tpu.memory_space<vmem>>, vector<1x128xf32>
    %35 = vector.broadcast %34 : vector<1x128xf32> to vector<64x128xf32>
    %36 = arith.addf %33, %35 : vector<64x128xf32>
    %c0_19 = arith.constant 0 : index
    %c0_20 = arith.constant 0 : index
    %c0_21 = arith.constant 0 : index
    %37 = vector.load %arg6[%c0_19, %c0_20, %c0_21] : memref<2x64x64xf32, #tpu.memory_space<vmem>>, vector<1x64x64xf32>
    %38 = vector.shape_cast %37 : vector<1x64x64xf32> to vector<64x64xf32>
    %39 = vector.extract_strided_slice %36 {offsets = [0, 0], sizes = [64, 64], strides = [1, 1]} : vector<64x128xf32> to vector<64x64xf32>
    %40 = arith.mulf %38, %39 : vector<64x64xf32>
    %41 = vector.extract_strided_slice %36 {offsets = [0, 64], sizes = [64, 64], strides = [1, 1]} : vector<64x128xf32> to vector<64x64xf32>
    %42 = arith.addf %40, %41 : vector<64x64xf32>
    %c0_22 = arith.constant 0 : index
    %c0_23 = arith.constant 0 : index
    %c0_24 = arith.constant 0 : index
    %43 = vector.load %arg7[%c0_22, %c0_23, %c0_24] : memref<2x64x64xf32, #tpu.memory_space<vmem>>, vector<1x64x64xf32>
    %44 = vector.shape_cast %43 : vector<1x64x64xf32> to vector<64x64xf32>
    %45 = vector.shape_cast %42 : vector<64x64xf32> to vector<1x64x64xf32>
    tpu.vector_store %arg7[%c0_22, %c0_23, %c0_24], %45 {strides = array<i32>} : memref<2x64x64xf32, #tpu.memory_space<vmem>>, vector<1x64x64xf32>,
    %c0_25 = arith.constant 0 : index
    %c0_26 = arith.constant 0 : index
    %46 = vector.load %arg2[%c0_25, %c0_26] : memref<64x576xf32, #tpu.memory_space<vmem>>, vector<64x576xf32>
    %c1_27 = arith.constant 1 : index
    %c0_28 = arith.constant 0 : index
    %c0_29 = arith.constant 0 : index
    %47 = vector.load %arg1[%c1_27, %c0_28, %c0_29] : memref<2x576x32xf32, #tpu.memory_space<vmem>>, vector<1x576x32xf32>
    %48 = vector.shape_cast %47 : vector<1x576x32xf32> to vector<576x32xf32>
    %cst_30 = arith.constant dense<0.000000e+00> : vector<64x32xf32>
    %49 = tpu.matmul %46, %48, %cst_30 {dimension_numbers = #tpu.dot_dimension_numbers<[1], [0], [0], [1], [0, 0, 1, 1], [], []>} : vector<64x576xf32>, vector<576x32xf32>, vector<64x32xf32> -> vector<64x32xf32>
    %cst_31 = arith.constant dense<0.000000e+00> : vector<64xf32>
    %50 = vector.multi_reduction <add>, %49, %cst_31 [1] : vector<64x32xf32> to vector<64xf32>
    %51 = vector.shape_cast %50 : vector<64xf32> to vector<64x1xf32>
    %cst_32 = arith.constant 3.200000e+01 : f32
    %52 = vector.broadcast %cst_32 : f32 to vector<64x1xf32>
    %53 = arith.divf %51, %52 : vector<64x1xf32>
    %54 = vector.broadcast %53 : vector<64x1xf32> to vector<64x32xf32>
    %55 = arith.subf %49, %54 : vector<64x32xf32>
    %56 = arith.mulf %55, %55 : vector<64x32xf32>
    %cst_33 = arith.constant dense<0.000000e+00> : vector<64xf32>
    %57 = vector.multi_reduction <add>, %56, %cst_33 [1] : vector<64x32xf32> to vector<64xf32>
    %58 = vector.shape_cast %57 : vector<64xf32> to vector<64x1xf32>
    %cst_34 = arith.constant 3.200000e+01 : f32
    %59 = vector.broadcast %cst_34 : f32 to vector<64x1xf32>
    %60 = arith.divf %58, %59 : vector<64x1xf32>
    %cst_35 = arith.constant 9.99999974E-6 : f32
    %61 = vector.broadcast %cst_35 : f32 to vector<64x1xf32>
    %62 = arith.addf %60, %61 : vector<64x1xf32>
    %63 = math.rsqrt %62 : vector<64x1xf32>
    %64 = vector.broadcast %63 : vector<64x1xf32> to vector<64x32xf32>
    %65 = arith.mulf %55, %64 : vector<64x32xf32>
    %c0_36 = arith.constant 0 : index
    %c0_37 = arith.constant 0 : index
    %66 = vector.load %arg3[%c0_36, %c0_37] : memref<64x3xf32, #tpu.memory_space<vmem>>, vector<64x1xf32>
    %67 = vector.broadcast %66 : vector<64x1xf32> to vector<64x32xf32>
    %68 = arith.mulf %65, %67 : vector<64x32xf32>
    %c0_38 = arith.constant 0 : index
    %c1_39 = arith.constant 1 : index
    %69 = vector.load %arg3[%c0_38, %c1_39] : memref<64x3xf32, #tpu.memory_space<vmem>>, vector<64x1xf32>
    %70 = vector.broadcast %69 : vector<64x1xf32> to vector<64x32xf32>
    %71 = arith.addf %68, %70 : vector<64x32xf32>
    %cst_40 = arith.constant 0.000000e+00 : f32
    %72 = vector.broadcast %cst_40 : f32 to vector<64x32xf32>
    %73 = arith.cmpf oge, %71, %72 : vector<64x32xf32>
    %c0_41 = arith.constant 0 : index
    %c2_42 = arith.constant 2 : index
    %74 = vector.load %arg3[%c0_41, %c2_42] : memref<64x3xf32, #tpu.memory_space<vmem>>, vector<64x1xf32>
    %75 = vector.broadcast %74 : vector<64x1xf32> to vector<64x32xf32>
    %76 = arith.mulf %75, %71 : vector<64x32xf32>
    %77 = arith.select %73, %71, %76 : vector<64x32xi1>, vector<64x32xf32>
    %c0_43 = arith.constant 0 : index
    %c0_44 = arith.constant 0 : index
    %78 = vector.load %arg4[%c0_43, %c0_44] : memref<32x128xf32, #tpu.memory_space<vmem>>, vector<32x128xf32>
    %cst_45 = arith.constant dense<0.000000e+00> : vector<64x128xf32>
    %79 = tpu.matmul %77, %78, %cst_45 {dimension_numbers = #tpu.dot_dimension_numbers<[1], [0], [0], [1], [0, 0, 1, 1], [], []>} : vector<64x32xf32>, vector<32x128xf32>, vector<64x128xf32> -> vector<64x128xf32>
    %c0_46 = arith.constant 0 : index
    %c0_47 = arith.constant 0 : index
    %80 = vector.load %arg5[%c0_46, %c0_47] : memref<1x128xf32, #tpu.memory_space<vmem>>, vector<1x128xf32>
    %81 = vector.broadcast %80 : vector<1x128xf32> to vector<64x128xf32>
    %82 = arith.addf %79, %81 : vector<64x128xf32>
    %c1_48 = arith.constant 1 : index
    %c0_49 = arith.constant 0 : index
    %c0_50 = arith.constant 0 : index
    %83 = vector.load %arg6[%c1_48, %c0_49, %c0_50] : memref<2x64x64xf32, #tpu.memory_space<vmem>>, vector<1x64x64xf32>
    %84 = vector.shape_cast %83 : vector<1x64x64xf32> to vector<64x64xf32>
    %85 = vector.extract_strided_slice %82 {offsets = [0, 0], sizes = [64, 64], strides = [1, 1]} : vector<64x128xf32> to vector<64x64xf32>
    %86 = arith.mulf %84, %85 : vector<64x64xf32>
    %87 = vector.extract_strided_slice %82 {offsets = [0, 64], sizes = [64, 64], strides = [1, 1]} : vector<64x128xf32> to vector<64x64xf32>
    %88 = arith.addf %86, %87 : vector<64x64xf32>
    %c1_51 = arith.constant 1 : index
    %c0_52 = arith.constant 0 : index
    %c0_53 = arith.constant 0 : index
    %89 = vector.load %arg7[%c1_51, %c0_52, %c0_53] : memref<2x64x64xf32, #tpu.memory_space<vmem>>, vector<1x64x64xf32>
    %90 = vector.shape_cast %89 : vector<1x64x64xf32> to vector<64x64xf32>
    %91 = vector.shape_cast %88 : vector<64x64xf32> to vector<1x64x64xf32>
    tpu.vector_store %arg7[%c1_51, %c0_52, %c0_53], %91 {strides = array<i32>} : memref<2x64x64xf32, #tpu.memory_space<vmem>>, vector<1x64x64xf32>,
    return
  }
  func.func @transform_0(%arg0: i32) -> (i32, i32, i32) {
    %c0_i32 = arith.constant 0 : i32
    %c0_i32_0 = arith.constant 0 : i32
    %c0_i32_1 = arith.constant 0 : i32
    return %arg0, %c0_i32, %c0_i32_0 : i32, i32, i32
  }
  func.func @transform_1(%arg0: i32) -> (i32, i32) {
    %c0_i32 = arith.constant 0 : i32
    %c0_i32_0 = arith.constant 0 : i32
    %c0_i32_1 = arith.constant 0 : i32
    return %c0_i32, %c0_i32_0 : i32, i32
  }
  func.func @transform_2(%arg0: i32) -> (i32, i32) {
    %c0_i32 = arith.constant 0 : i32
    %c0_i32_0 = arith.constant 0 : i32
    %c0_i32_1 = arith.constant 0 : i32
    return %c0_i32, %c0_i32_0 : i32, i32
  }
  func.func @transform_3(%arg0: i32) -> (i32, i32) {
    %c0_i32 = arith.constant 0 : i32
    %c0_i32_0 = arith.constant 0 : i32
    %c0_i32_1 = arith.constant 0 : i32
    return %c0_i32, %c0_i32_0 : i32, i32
  }
  func.func @transform_4(%arg0: i32) -> (i32, i32) {
    %c0_i32 = arith.constant 0 : i32
    %c0_i32_0 = arith.constant 0 : i32
    %c0_i32_1 = arith.constant 0 : i32
    return %c0_i32, %c0_i32_0 : i32, i32
  }
  func.func @transform_5(%arg0: i32) -> (i32, i32, i32) {
    %c0_i32 = arith.constant 0 : i32
    %c0_i32_0 = arith.constant 0 : i32
    %c0_i32_1 = arith.constant 0 : i32
    return %arg0, %c0_i32, %c0_i32_0 : i32, i32, i32
  }
  func.func @transform_6(%arg0: i32) -> (i32, i32, i32) {
    %c0_i32 = arith.constant 0 : i32
    %c0_i32_0 = arith.constant 0 : i32
    %c0_i32_1 = arith.constant 0 : i32
    return %arg0, %c0_i32, %c0_i32_0 : i32, i32, i32
  }
}

</mosaic_0001>

<llo_original>
// kernel: film2f_forward.1
$region0: #{film2f_forward.1}
  #allocation0 [shape = 'u32[]', space=smem, size = 0x4, offset = 0x4, fixed_abs, tag = 'smem constant byte address 0x4 - core index']
  #allocation1 [shape = 'u32[144,128]{1,0:T(1,128)}', space=vmem, size = 0x12000, scoped, tag = 'internal scratch']
  %s0 = inlined_call_operand.vmem [shape: f32[2,576,32], index: 0, kind: input, shape index: {}]
  %s1 = inlined_call_operand.vmem [shape: f32[64,576], index: 1, kind: input, shape index: {}]
  %s2 = inlined_call_operand.vmem [shape: f32[64,3], index: 2, kind: input, shape index: {}]
  %s3 = inlined_call_operand.vmem [shape: f32[32,128], index: 3, kind: input, shape index: {}]
  %s4 = inlined_call_operand.vmem [shape: f32[1,128], index: 4, kind: input, shape index: {}]
  %s5 = inlined_call_operand.vmem [shape: f32[2,64,64], index: 5, kind: input, shape index: {}]
  %s6 = inlined_call_operand.vmem [shape: f32[2,64,64], index: 6, kind: output, shape index: {}]
  %s7 = sld [smem:[#allocation0]]
  $region34: #{film2f_forward.1} parent=0
    _
  %s9 = ssub.s32 1, %s7
  %s10 = scalar_select 0, %s9, %s7
  // Predicated region
  $region2: #{film2f_forward.1} parent=0 // pred_check
    _
  $region3: #{film2f_forward.1} parent=0 // pred_check_branch
    %12 = sbr.rel (0) target = $region5
  $region4: #{film2f_forward.1} parent=0 // pred_region
    _
  $region5: #{film2f_forward.1} parent=0 // pred_fallthru
    _
  // Predicated region
  $region6: #{film2f_forward.1} parent=0 // pred_check
    _
  $region7: #{film2f_forward.1} parent=0 // pred_check_branch
    %14 = sbr.rel (0) target = $region9
  $region8: #{film2f_forward.1} parent=0 // pred_region
    _
  $region9: #{film2f_forward.1} parent=0 // pred_fallthru
    _
  // Predicated region
  $region10: #{film2f_forward.1} parent=0 // pred_check
    _
  $region11: #{film2f_forward.1} parent=0 // pred_check_branch
    %16 = sbr.rel (0) target = $region13
  $region12: #{film2f_forward.1} parent=0 // pred_region
    _
  $region13: #{film2f_forward.1} parent=0 // pred_fallthru
    _
  // Predicated region
  $region14: #{film2f_forward.1} parent=0 // pred_check
    _
  $region15: #{film2f_forward.1} parent=0 // pred_check_branch
    %18 = sbr.rel (0) target = $region17
  $region16: #{film2f_forward.1} parent=0 // pred_region
    _
  $region17: #{film2f_forward.1} parent=0 // pred_fallthru
    _
  // Predicated region
  $region18: #{film2f_forward.1} parent=0 // pred_check
    _
  $region19: #{film2f_forward.1} parent=0 // pred_check_branch
    %20 = sbr.rel (0) target = $region21
  $region20: #{film2f_forward.1} parent=0 // pred_region
    _
  $region21: #{film2f_forward.1} parent=0 // pred_fallthru
    _
  // Predicated region
  $region22: #{film2f_forward.1} parent=0 // pred_check
    _
  $region23: #{film2f_forward.1} parent=0 // pred_check_branch
    %22 = sbr.rel (0) target = $region25
  $region24: #{film2f_forward.1} parent=0 // pred_region
    _
  $region25: #{film2f_forward.1} parent=0 // pred_fallthru
    _
  %v23 = vld [vmem:[%s1] sm:$0xff]
  %v24 = vld [vmem:[%s1 + $0x8] sm:$0xff]
  %v25 = vld [vmem:[%s1 + $0x10] sm:$0xff]
  %v26 = vld [vmem:[%s1 + $0x18] sm:$0xff]
  %v27 = vld [vmem:[%s1 + $0x20] sm:$0xff]
  %v28 = vld [vmem:[%s1 + $0x28] sm:$0xff]
  %v29 = vld [vmem:[%s1 + $0x30] sm:$0xff]
  %v30 = vld [vmem:[%s1 + $0x38] sm:$0xff]
  %v31 = vld [vmem:[%s1 + $0x40] sm:$0xff]
  %v32 = vld [vmem:[%s1 + $0x48] sm:$0xff]
  %v33 = vld [vmem:[%s1 + $0x50] sm:$0xff]
  %v34 = vld [vmem:[%s1 + $0x58] sm:$0xff]
  %v35 = vld [vmem:[%s1 + $0x60] sm:$0xff]
  %v36 = vld [vmem:[%s1 + $0x68] sm:$0xff]
  %v37 = vld [vmem:[%s1 + $0x70] sm:$0xff]
  %v38 = vld [vmem:[%s1 + $0x78] sm:$0xff]
  %v39 = vld [vmem:[%s1 + $0x80] sm:$0xff]
  %v40 = vld [vmem:[%s1 + $0x88] sm:$0xff]
  %v41 = vld [vmem:[%s1 + $0x90] sm:$0xff]
  %v42 = vld [vmem:[%s1 + $0x98] sm:$0xff]
  %v43 = vld [vmem:[%s1 + $0xa0] sm:$0xff]
  %v44 = vld [vmem:[%s1 + $0xa8] sm:$0xff]
  %v45 = vld [vmem:[%s1 + $0xb0] sm:$0xff]
  %v46 = vld [vmem:[%s1 + $0xb8] sm:$0xff]
  %v47 = vld [vmem:[%s1 + $0xc0] sm:$0xff]
  %v48 = vld [vmem:[%s1 + $0xc8] sm:$0xff]
  %v49 = vld [vmem:[%s1 + $0xd0] sm:$0xff]
  %v50 = vld [vmem:[%s1 + $0xd8] sm:$0xff]
  %v51 = vld [vmem:[%s1 + $0xe0] sm:$0xff]
  %v52 = vld [vmem:[%s1 + $0xe8] sm:$0xff]
  %v53 = vld [vmem:[%s1 + $0xf0] sm:$0xff]
  %v54 = vld [vmem:[%s1 + $0xf8] sm:$0xff]
  %v55 = vld [vmem:[%s1 + $0x100] sm:$0xff]
  %v56 = vld [vmem:[%s1 + $0x108] sm:$0xff]
  %v57 = vld [vmem:[%s1 + $0x110] sm:$0xff]
  %v58 = vld [vmem:[%s1 + $0x118] sm:$0xff]
  %v59 = vld [vmem:[%s1 + $0x120] sm:$0xff]
  %v60 = vld [vmem:[%s1 + $0x128] sm:$0xff]
  %v61 = vld [vmem:[%s1 + $0x130] sm:$0xff]
  %v62 = vld [vmem:[%s1 + $0x138] sm:$0xff]
  %v63 = vld [vmem:[%s0] sm:$0xff]
  %v64 = vld [vmem:[%s0 + $0x8] sm:$0xff]
  %v65 = vld [vmem:[%s0 + $0x10] sm:$0xff]
  %v66 = vld [vmem:[%s0 + $0x18] sm:$0xff]
  %v67 = vld [vmem:[%s0 + $0x20] sm:$0xff]
  %v68 = vld [vmem:[%s0 + $0x28] sm:$0xff]
  %v69 = vld [vmem:[%s0 + $0x30] sm:$0xff]
  %v70 = vld [vmem:[%s0 + $0x38] sm:$0xff]
  %v71 = vld [vmem:[%s0 + $0x40] sm:$0xff]
  %v72 = vld [vmem:[%s0 + $0x48] sm:$0xff]
  %v73 = vld [vmem:[%s0 + $0x50] sm:$0xff]
  %v74 = vld [vmem:[%s0 + $0x58] sm:$0xff]
  %v75 = vld [vmem:[%s0 + $0x60] sm:$0xff]
  %v76 = vld [vmem:[%s0 + $0x68] sm:$0xff]
  %v77 = vld [vmem:[%s0 + $0x70] sm:$0xff]
  %v78 = vld [vmem:[%s0 + $0x78] sm:$0xff]
  %v79 = vld [vmem:[%s0 + $0x80] sm:$0xff]
  %v80 = vld [vmem:[%s0 + $0x88] sm:$0xff]
  %v81 = vld [vmem:[%s0 + $0x90] sm:$0xff]
  %v82 = vld [vmem:[%s0 + $0x98] sm:$0xff]
  %v83 = vld [vmem:[%s0 + $0xa0] sm:$0xff]
  %v84 = vld [vmem:[%s0 + $0xa8] sm:$0xff]
  %v85 = vld [vmem:[%s0 + $0xb0] sm:$0xff]
  %v86 = vld [vmem:[%s0 + $0xb8] sm:$0xff]
  %v87 = vld [vmem:[%s0 + $0xc0] sm:$0xff]
  %v88 = vld [vmem:[%s0 + $0xc8] sm:$0xff]
  %v89 = vld [vmem:[%s0 + $0xd0] sm:$0xff]
  %v90 = vld [vmem:[%s0 + $0xd8] sm:$0xff]
  %v91 = vld [vmem:[%s0 + $0xe0] sm:$0xff]
  %v92 = vld [vmem:[%s0 + $0xe8] sm:$0xff]
  %v93 = vld [vmem:[%s0 + $0xf0] sm:$0xff]
  %v94 = vld [vmem:[%s0 + $0xf8] sm:$0xff]
  %v95 = vld [vmem:[%s0 + $0x100] sm:$0xff]
  %v96 = vld [vmem:[%s0 + $0x108] sm:$0xff]
  %v97 = vld [vmem:[%s0 + $0x110] sm:$0xff]
  %v98 = vld [vmem:[%s0 + $0x118] sm:$0xff]
  %v99 = vld [vmem:[%s0 + $0x120] sm:$0xff]
  %v100 = vld [vmem:[%s0 + $0x128] sm:$0xff]
  %v101 = vld [vmem:[%s0 + $0x130] sm:$0xff]
  %v102 = vld [vmem:[%s0 + $0x138] sm:$0xff]
  %v103 = vld [vmem:[%s0 + $0x140] sm:$0xff]
  %v104 = vld [vmem:[%s0 + $0x148] sm:$0xff]
  %v105 = vld [vmem:[%s0 + $0x150] sm:$0xff]
  %v106 = vld [vmem:[%s0 + $0x158] sm:$0xff]
  %v107 = vld [vmem:[%s0 + $0x160] sm:$0xff]
  %v108 = vld [vmem:[%s0 + $0x168] sm:$0xff]
  %v109 = vld [vmem:[%s0 + $0x170] sm:$0xff]
  %v110 = vld [vmem:[%s0 + $0x178] sm:$0xff]
  %v111 = vld [vmem:[%s0 + $0x180] sm:$0xff]
  %v112 = vld [vmem:[%s0 + $0x188] sm:$0xff]
  %v113 = vld [vmem:[%s0 + $0x190] sm:$0xff]
  %v114 = vld [vmem:[%s0 + $0x198] sm:$0xff]
  %v115 = vld [vmem:[%s0 + $0x1a0] sm:$0xff]
  %v116 = vld [vmem:[%s0 + $0x1a8] sm:$0xff]
  %v117 = vld [vmem:[%s0 + $0x1b0] sm:$0xff]
  %v118 = vld [vmem:[%s0 + $0x1b8] sm:$0xff]
  %v119 = vld [vmem:[%s0 + $0x1c0] sm:$0xff]
  %v120 = vld [vmem:[%s0 + $0x1c8] sm:$0xff]
  %v121 = vld [vmem:[%s0 + $0x1d0] sm:$0xff]
  %v122 = vld [vmem:[%s0 + $0x1d8] sm:$0xff]
  %v123 = vld [vmem:[%s0 + $0x1e0] sm:$0xff]
  %v124 = vld [vmem:[%s0 + $0x1e8] sm:$0xff]
  %v125 = vld [vmem:[%s0 + $0x1f0] sm:$0xff]
  %v126 = vld [vmem:[%s0 + $0x1f8] sm:$0xff]
  %v127 = vld [vmem:[%s0 + $0x200] sm:$0xff]
  %v128 = vld [vmem:[%s0 + $0x208] sm:$0xff]
  %v129 = vld [vmem:[%s0 + $0x210] sm:$0xff]
  %v130 = vld [vmem:[%s0 + $0x218] sm:$0xff]
  %v131 = vld [vmem:[%s0 + $0x220] sm:$0xff]
  %v132 = vld [vmem:[%s0 + $0x228] sm:$0xff]
  %v133 = vld [vmem:[%s0 + $0x230] sm:$0xff]
  %v134 = vld [vmem:[%s0 + $0x238] sm:$0xff]
  %vm135 = vcmask 523264
  %v137 = vsel %vm135, %v27, 0
  %v140 = vsel %vm135, %v32, 0
  %v143 = vsel %vm135, %v37, 0
  %v146 = vsel %vm135, %v42, 0
  %v149 = vsel %vm135, %v47, 0
  %v152 = vsel %vm135, %v52, 0
  %v155 = vsel %vm135, %v57, 0
  %v158 = vsel %vm135, %v62, 0
  %160 = vmatprep.subr.mxu0 0.0
  %161 = vmatpush1.msra.mxu0 %v78
  %162 = vmatprep.subr.mxu0 0.0
  %163 = vmatpush1.msra.mxu0 %v77
  %164 = vmatprep.subr.mxu0 0.0
  %165 = vmatpush1.msra.mxu0 %v76
  %166 = vmatprep.subr.mxu0 0.0
  %167 = vmatpush1.msra.mxu0 %v75
  %168 = vmatprep.subr.mxu0 0.0
  %169 = vmatpush1.msra.mxu0 %v74
  %170 = vmatprep.subr.mxu0 0.0
  %171 = vmatpush1.msra.mxu0 %v73
  %172 = vmatprep.subr.mxu0 0.0
  %173 = vmatpush1.msra.mxu0 %v72
  %174 = vmatprep.subr.mxu0 0.0
  %175 = vmatpush1.msra.mxu0 %v71
  %176 = vmatprep.subr.mxu0 0.0
  %177 = vmatpush1.msra.mxu0 %v70
  %178 = vmatprep.subr.mxu0 0.0
  %179 = vmatpush1.msra.mxu0 %v69
  %180 = vmatprep.subr.mxu0 0.0
  %181 = vmatpush1.msra.mxu0 %v68
  %182 = vmatprep.subr.mxu0 0.0
  %183 = vmatpush1.msra.mxu0 %v67
  %184 = vmatprep.subr.mxu0 0.0
  %185 = vmatpush1.msra.mxu0 %v66
  %186 = vmatprep.subr.mxu0 0.0
  %187 = vmatpush1.msra.mxu0 %v65
  %188 = vmatprep.subr.mxu0 0.0
  %189 = vmatpush1.msra.mxu0 %v64
  %190 = vmatprep.subr.mxu0 0.0
  %191 = vmatpush1.msra.mxu0 %v63
  %192 = vmatprep.subr.mxu0 0.0
  %193 = vmatpush2.msra.mxu0 %v94
  %194 = vmatprep.subr.mxu0 0.0
  %195 = vmatpush2.msra.mxu0 %v93
  %196 = vmatprep.subr.mxu0 0.0
  %197 = vmatpush2.msra.mxu0 %v92
  %198 = vmatprep.subr.mxu0 0.0
  %199 = vmatpush2.msra.mxu0 %v91
  %200 = vmatprep.subr.mxu0 0.0
  %201 = vmatpush2.msra.mxu0 %v90
  %202 = vmatprep.subr.mxu0 0.0
  %203 = vmatpush2.msra.mxu0 %v89
  %204 = vmatprep.subr.mxu0 0.0
  %205 = vmatpush2.msra.mxu0 %v88
  %206 = vmatprep.subr.mxu0 0.0
  %207 = vmatpush2.msra.mxu0 %v87
  %208 = vmatprep.subr.mxu0 0.0
  %209 = vmatpush2.msra.mxu0 %v86
  %210 = vmatprep.subr.mxu0 0.0
  %211 = vmatpush2.msra.mxu0 %v85
  %212 = vmatprep.subr.mxu0 0.0
  %213 = vmatpush2.msra.mxu0 %v84
  %214 = vmatprep.subr.mxu0 0.0
  %215 = vmatpush2.msra.mxu0 %v83
  %216 = vmatprep.subr.mxu0 0.0
  %217 = vmatpush2.msra.mxu0 %v82
  %218 = vmatprep.subr.mxu0 0.0
  %219 = vmatpush2.msra.mxu0 %v81
  %220 = vmatprep.subr.mxu0 0.0
  %221 = vmatpush2.msra.mxu0 %v80
  %222 = vmatprep.subr.mxu0 0.0
  %223 = vmatpush2.msra.mxu0 %v79
  %224 = vmatprep.mubr.f32.mxu0 %v24
  %225 = vmatmul.mubr.f32.gmra.mxu0 %v23
  %v226 = vpop.f32.mrf.mxu0
  %v227 = vadd.f32 0.0, %v226
  %v228 = vpop.f32.mrf.mxu0
  %229 = vmatprep.mubr.f32.mxu0 %v29
  %230 = vmatmul.mubr.f32.gmra.mxu0 %v28
  %v231 = vpop.f32.mrf.mxu0
  %v232 = vadd.f32 0.0, %v231
  %v233 = vpop.f32.mrf.mxu0
  %234 = vmatprep.mubr.f32.mxu0 %v34
  %235 = vmatmul.mubr.f32.gmra.mxu0 %v33
  %v236 = vpop.f32.mrf.mxu0
  %v237 = vadd.f32 0.0, %v236
  %v238 = vpop.f32.mrf.mxu0
  %239 = vmatprep.mubr.f32.mxu0 %v39
  %240 = vmatmul.mubr.f32.gmra.mxu0 %v38
  %v241 = vpop.f32.mrf.mxu0
  %v242 = vadd.f32 0.0, %v241
  %v243 = vpop.f32.mrf.mxu0
  %244 = vmatprep.mubr.f32.mxu0 %v44
  %245 = vmatmul.mubr.f32.gmra.mxu0 %v43
  %v246 = vpop.f32.mrf.mxu0
  %v247 = vadd.f32 0.0, %v246
  %v248 = vpop.f32.mrf.mxu0
  %249 = vmatprep.mubr.f32.mxu0 %v49
  %250 = vmatmul.mubr.f32.gmra.mxu0 %v48
  %v251 = vpop.f32.mrf.mxu0
  %v252 = vadd.f32 0.0, %v251
  %v253 = vpop.f32.mrf.mxu0
  %254 = vmatprep.mubr.f32.mxu0 %v54
  %255 = vmatmul.mubr.f32.gmra.mxu0 %v53
  %v256 = vpop.f32.mrf.mxu0
  %v257 = vadd.f32 0.0, %v256
  %v258 = vpop.f32.mrf.mxu0
  %259 = vmatprep.mubr.f32.mxu0 %v59
  %260 = vmatmul.mubr.f32.gmra.mxu0 %v58
  %v261 = vpop.f32.mrf.mxu0
  %v262 = vadd.f32 0.0, %v261
  %v263 = vpop.f32.mrf.mxu0
  %264 = vdwg.mxu0
  %265 = vmatprep.subr.mxu0 0.0
  %266 = vmatpush1.msra.mxu0 %v110
  %267 = vmatprep.subr.mxu0 0.0
  %268 = vmatpush1.msra.mxu0 %v109
  %269 = vmatprep.subr.mxu0 0.0
  %270 = vmatpush1.msra.mxu0 %v108
  %271 = vmatprep.subr.mxu0 0.0
  %272 = vmatpush1.msra.mxu0 %v107
  %273 = vmatprep.subr.mxu0 0.0
  %274 = vmatpush1.msra.mxu0 %v106
  %275 = vmatprep.subr.mxu0 0.0
  %276 = vmatpush1.msra.mxu0 %v105
  %277 = vmatprep.subr.mxu0 0.0
  %278 = vmatpush1.msra.mxu0 %v104
  %279 = vmatprep.subr.mxu0 0.0
  %280 = vmatpush1.msra.mxu0 %v103
  %281 = vmatprep.subr.mxu0 0.0
  %282 = vmatpush1.msra.mxu0 %v102
  %283 = vmatprep.subr.mxu0 0.0
  %284 = vmatpush1.msra.mxu0 %v101
  %285 = vmatprep.subr.mxu0 0.0
  %286 = vmatpush1.msra.mxu0 %v100
  %287 = vmatprep.subr.mxu0 0.0
  %288 = vmatpush1.msra.mxu0 %v99
  %289 = vmatprep.subr.mxu0 0.0
  %290 = vmatpush1.msra.mxu0 %v98
  %291 = vmatprep.subr.mxu0 0.0
  %292 = vmatpush1.msra.mxu0 %v97
  %293 = vmatprep.subr.mxu0 0.0
  %294 = vmatpush1.msra.mxu0 %v96
  %295 = vmatprep.subr.mxu0 0.0
  %296 = vmatpush1.msra.mxu0 %v95
  %297 = vmatprep.subr.mxu0 0.0
  %298 = vmatpush2.msra.mxu0 %v126
  %299 = vmatprep.subr.mxu0 0.0
  %300 = vmatpush2.msra.mxu0 %v125
  %301 = vmatprep.subr.mxu0 0.0
  %302 = vmatpush2.msra.mxu0 %v124
  %303 = vmatprep.subr.mxu0 0.0
  %304 = vmatpush2.msra.mxu0 %v123
  %305 = vmatprep.subr.mxu0 0.0
  %306 = vmatpush2.msra.mxu0 %v122
  %307 = vmatprep.subr.mxu0 0.0
  %308 = vmatpush2.msra.mxu0 %v121
  %309 = vmatprep.subr.mxu0 0.0
  %310 = vmatpush2.msra.mxu0 %v120
  %311 = vmatprep.subr.mxu0 0.0
  %312 = vmatpush2.msra.mxu0 %v119
  %313 = vmatprep.subr.mxu0 0.0
  %314 = vmatpush2.msra.mxu0 %v118
  %315 = vmatprep.subr.mxu0 0.0
  %316 = vmatpush2.msra.mxu0 %v117
  %317 = vmatprep.subr.mxu0 0.0
  %318 = vmatpush2.msra.mxu0 %v116
  %319 = vmatprep.subr.mxu0 0.0
  %320 = vmatpush2.msra.mxu0 %v115
  %321 = vmatprep.subr.mxu0 0.0
  %322 = vmatpush2.msra.mxu0 %v114
  %323 = vmatprep.subr.mxu0 0.0
  %324 = vmatpush2.msra.mxu0 %v113
  %325 = vmatprep.subr.mxu0 0.0
  %326 = vmatpush2.msra.mxu0 %v112
  %327 = vmatprep.subr.mxu0 0.0
  %328 = vmatpush2.msra.mxu0 %v111
  %329 = vmatprep.mubr.f32.mxu0 %v26
  %330 = vmatmul.mubr.f32.gmra.mxu0 %v25
  %v331 = vpop.f32.mrf.mxu0
  %v332 = vadd.f32 %v227, %v331
  %v333 = vpop.f32.mrf.mxu0
  %334 = vmatprep.mubr.f32.mxu0 %v31
  %335 = vmatmul.mubr.f32.gmra.mxu0 %v30
  %v336 = vpop.f32.mrf.mxu0
  %v337 = vadd.f32 %v232, %v336
  %v338 = vpop.f32.mrf.mxu0
  %339 = vmatprep.mubr.f32.mxu0 %v36
  %340 = vmatmul.mubr.f32.gmra.mxu0 %v35
  %v341 = vpop.f32.mrf.mxu0
  %v342 = vadd.f32 %v237, %v341
  %v343 = vpop.f32.mrf.mxu0
  %344 = vmatprep.mubr.f32.mxu0 %v41
  %345 = vmatmul.mubr.f32.gmra.mxu0 %v40
  %v346 = vpop.f32.mrf.mxu0
  %v347 = vadd.f32 %v242, %v346
  %v348 = vpop.f32.mrf.mxu0
  %349 = vmatprep.mubr.f32.mxu0 %v46
  %350 = vmatmul.mubr.f32.gmra.mxu0 %v45
  %v351 = vpop.f32.mrf.mxu0
  %v352 = vadd.f32 %v247, %v351
  %v353 = vpop.f32.mrf.mxu0
  %354 = vmatprep.mubr.f32.mxu0 %v51
  %355 = vmatmul.mubr.f32.gmra.mxu0 %v50
  %v356 = vpop.f32.mrf.mxu0
  %v357 = vadd.f32 %v252, %v356
  %v358 = vpop.f32.mrf.mxu0
  %359 = vmatprep.mubr.f32.mxu0 %v56
  %360 = vmatmul.mubr.f32.gmra.mxu0 %v55
  %v361 = vpop.f32.mrf.mxu0
  %v362 = vadd.f32 %v257, %v361
  %v363 = vpop.f32.mrf.mxu0
  %364 = vmatprep.mubr.f32.mxu0 %v61
  %365 = vmatmul.mubr.f32.gmra.mxu0 %v60
  %v366 = vpop.f32.mrf.mxu0
  %v367 = vadd.f32 %v262, %v366
  %v368 = vpop.f32.mrf.mxu0
  %369 = vdwg.mxu0
  %370 = vmatprep.subr.mxu0 0.0
  %371 = vmatpush1.msra.mxu0 0.0
  %372 = vmatprep.subr.mxu0 0.0
  %373 = vmatpush1.msra.mxu0 0.0
  %374 = vmatprep.subr.mxu0 0.0
  %375 = vmatpush1.msra.mxu0 0.0
  %376 = vmatprep.subr.mxu0 0.0
  %377 = vmatpush1.msra.mxu0 0.0
  %378 = vmatprep.subr.mxu0 0.0
  %379 = vmatpush1.msra.mxu0 0.0
  %380 = vmatprep.subr.mxu0 0.0
  %381 = vmatpush1.msra.mxu0 0.0
  %382 = vmatprep.subr.mxu0 0.0
  %383 = vmatpush1.msra.mxu0 0.0
  %384 = vmatprep.subr.mxu0 0.0
  %385 = vmatpush1.msra.mxu0 0.0
  %386 = vmatprep.subr.mxu0 0.0
  %387 = vmatpush1.msra.mxu0 %v134
  %388 = vmatprep.subr.mxu0 0.0
  %389 = vmatpush1.msra.mxu0 %v133
  %390 = vmatprep.subr.mxu0 0.0
  %391 = vmatpush1.msra.mxu0 %v132
  %392 = vmatprep.subr.mxu0 0.0
  %393 = vmatpush1.msra.mxu0 %v131
  %394 = vmatprep.subr.mxu0 0.0
  %395 = vmatpush1.msra.mxu0 %v130
  %396 = vmatprep.subr.mxu0 0.0
  %397 = vmatpush1.msra.mxu0 %v129
  %398 = vmatprep.subr.mxu0 0.0
  %399 = vmatpush1.msra.mxu0 %v128
  %400 = vmatprep.subr.mxu0 0.0
  %401 = vmatpush1.msra.mxu0 %v127
  %402 = vmatprep.subr.mxu0 0.0
  %403 = vmatpush2.msra.mxu0 0.0
  %404 = vmatprep.subr.mxu0 0.0
  %405 = vmatpush2.msra.mxu0 0.0
  %406 = vmatprep.subr.mxu0 0.0
  %407 = vmatpush2.msra.mxu0 0.0
  %408 = vmatprep.subr.mxu0 0.0
  %409 = vmatpush2.msra.mxu0 0.0
  %410 = vmatprep.subr.mxu0 0.0
  %411 = vmatpush2.msra.mxu0 0.0
  %412 = vmatprep.subr.mxu0 0.0
  %413 = vmatpush2.msra.mxu0 0.0
  %414 = vmatprep.subr.mxu0 0.0
  %415 = vmatpush2.msra.mxu0 0.0
  %416 = vmatprep.subr.mxu0 0.0
  %417 = vmatpush2.msra.mxu0 0.0
  %418 = vmatprep.subr.mxu0 0.0
  %419 = vmatpush2.msra.mxu0 0.0
  %420 = vmatprep.subr.mxu0 0.0
  %421 = vmatpush2.msra.mxu0 0.0
  %422 = vmatprep.subr.mxu0 0.0
  %423 = vmatpush2.msra.mxu0 0.0
  %424 = vmatprep.subr.mxu0 0.0
  %425 = vmatpush2.msra.mxu0 0.0
  %426 = vmatprep.subr.mxu0 0.0
  %427 = vmatpush2.msra.mxu0 0.0
  %428 = vmatprep.subr.mxu0 0.0
  %429 = vmatpush2.msra.mxu0 0.0
  %430 = vmatprep.subr.mxu0 0.0
  %431 = vmatpush2.msra.mxu0 0.0
  %432 = vmatprep.subr.mxu0 0.0
  %433 = vmatpush2.msra.mxu0 0.0
  %434 = vmatprep.mubr.f32.mxu0 0.0
  %435 = vmatmul.mubr.f32.gmra.mxu0 %v137
  %v436 = vpop.f32.mrf.mxu0
  %v437 = vadd.f32 %v332, %v436
  %v438 = vpop.f32.mrf.mxu0
  %439 = vmatprep.mubr.f32.mxu0 0.0
  %440 = vmatmul.mubr.f32.gmra.mxu0 %v140
  %v441 = vpop.f32.mrf.mxu0
  %v442 = vadd.f32 %v337, %v441
  %v443 = vpop.f32.mrf.mxu0
  %444 = vmatprep.mubr.f32.mxu0 0.0
  %445 = vmatmul.mubr.f32.gmra.mxu0 %v143
  %v446 = vpop.f32.mrf.mxu0
  %v447 = vadd.f32 %v342, %v446
  %v448 = vpop.f32.mrf.mxu0
  %449 = vmatprep.mubr.f32.mxu0 0.0
  %450 = vmatmul.mubr.f32.gmra.mxu0 %v146
  %v451 = vpop.f32.mrf.mxu0
  %v452 = vadd.f32 %v347, %v451
  %v453 = vpop.f32.mrf.mxu0
  %454 = vmatprep.mubr.f32.mxu0 0.0
  %455 = vmatmul.mubr.f32.gmra.mxu0 %v149
  %v456 = vpop.f32.mrf.mxu0
  %v457 = vadd.f32 %v352, %v456
  %v458 = vpop.f32.mrf.mxu0
  %459 = vmatprep.mubr.f32.mxu0 0.0
  %460 = vmatmul.mubr.f32.gmra.mxu0 %v152
  %v461 = vpop.f32.mrf.mxu0
  %v462 = vadd.f32 %v357, %v461
  %v463 = vpop.f32.mrf.mxu0
  %464 = vmatprep.mubr.f32.mxu0 0.0
  %465 = vmatmul.mubr.f32.gmra.mxu0 %v155
  %v466 = vpop.f32.mrf.mxu0
  %v467 = vadd.f32 %v362, %v466
  %v468 = vpop.f32.mrf.mxu0
  %469 = vmatprep.mubr.f32.mxu0 0.0
  %470 = vmatmul.mubr.f32.gmra.mxu0 %v158
  %v471 = vpop.f32.mrf.mxu0
  %v472 = vadd.f32 %v367, %v471
  %v473 = vpop.f32.mrf.mxu0
  %474 = vdwg.mxu0
  %vm475 = vcmask 261120
  %v476 = vsel %vm475, %v437, 0.0
  %477 = vadd.xlane.f32.xlu0 %v476
  %v478 = vpop.xlane.xlu0 %477
  %v479 = vsel %vm475, %v442, 0.0
  %480 = vadd.xlane.f32.xlu0 %v479
  %v481 = vpop.xlane.xlu0 %480
  %v482 = vsel %vm475, %v447, 0.0
  %483 = vadd.xlane.f32.xlu0 %v482
  %v484 = vpop.xlane.xlu0 %483
  %v485 = vsel %vm475, %v452, 0.0
  %486 = vadd.xlane.f32.xlu0 %v485
  %v487 = vpop.xlane.xlu0 %486
  %v488 = vsel %vm475, %v457, 0.0
  %489 = vadd.xlane.f32.xlu0 %v488
  %v490 = vpop.xlane.xlu0 %489
  %v491 = vsel %vm475, %v462, 0.0
  %492 = vadd.xlane.f32.xlu0 %v491
  %v493 = vpop.xlane.xlu0 %492
  %v494 = vsel %vm475, %v467, 0.0
  %495 = vadd.xlane.f32.xlu0 %v494
  %v496 = vpop.xlane.xlu0 %495
  %v497 = vsel %vm475, %v472, 0.0
  %498 = vadd.xlane.f32.xlu0 %v497
  %v499 = vpop.xlane.xlu0 %498
  %v500 = vrcp.pop 32.0
  %v501 = vmul.f32 %v478, %v500
  %v502 = vmul.f32 %v481, %v500
  %v503 = vmul.f32 %v484, %v500
  %v504 = vmul.f32 %v487, %v500
  %v505 = vmul.f32 %v490, %v500
  %v506 = vmul.f32 %v493, %v500
  %v507 = vmul.f32 %v496, %v500
  %v508 = vmul.f32 %v499, %v500
  %v509 = vsub.f32 %v437, %v501
  %v510 = vsub.f32 %v442, %v502
  %v511 = vsub.f32 %v447, %v503
  %v512 = vsub.f32 %v452, %v504
  %v513 = vsub.f32 %v457, %v505
  %v514 = vsub.f32 %v462, %v506
  %v515 = vsub.f32 %v467, %v507
  %v516 = vsub.f32 %v472, %v508
  %v517 = vmul.f32 %v509, %v509
  %v518 = vmul.f32 %v510, %v510
  %v519 = vmul.f32 %v511, %v511
  %v520 = vmul.f32 %v512, %v512
  %v521 = vmul.f32 %v513, %v513
  %v522 = vmul.f32 %v514, %v514
  %v523 = vmul.f32 %v515, %v515
  %v524 = vmul.f32 %v516, %v516
  %v525 = vsel %vm475, %v517, 0.0
  %526 = vadd.xlane.f32.xlu0 %v525
  %v527 = vpop.xlane.xlu0 %526
  %v528 = vsel %vm475, %v518, 0.0
  %529 = vadd.xlane.f32.xlu0 %v528
  %v530 = vpop.xlane.xlu0 %529
  %v531 = vsel %vm475, %v519, 0.0
  %532 = vadd.xlane.f32.xlu0 %v531
  %v533 = vpop.xlane.xlu0 %532
  %v534 = vsel %vm475, %v520, 0.0
  %535 = vadd.xlane.f32.xlu0 %v534
  %v536 = vpop.xlane.xlu0 %535
  %v537 = vsel %vm475, %v521, 0.0
  %538 = vadd.xlane.f32.xlu0 %v537
  %v539 = vpop.xlane.xlu0 %538
  %v540 = vsel %vm475, %v522, 0.0
  %541 = vadd.xlane.f32.xlu0 %v540
  %v542 = vpop.xlane.xlu0 %541
  %v543 = vsel %vm475, %v523, 0.0
  %544 = vadd.xlane.f32.xlu0 %v543
  %v545 = vpop.xlane.xlu0 %544
  %v546 = vsel %vm475, %v524, 0.0
  %547 = vadd.xlane.f32.xlu0 %v546
  %v548 = vpop.xlane.xlu0 %547
  %v549 = vmul.f32 %v527, %v500
  %v550 = vmul.f32 %v530, %v500
  %v551 = vmul.f32 %v533, %v500
  %v552 = vmul.f32 %v536, %v500
  %v553 = vmul.f32 %v539, %v500
  %v554 = vmul.f32 %v542, %v500
  %v555 = vmul.f32 %v545, %v500
  %v556 = vmul.f32 %v548, %v500
  %v557 = vadd.f32 %v549, 1e-05
  %v558 = vadd.f32 %v550, 1e-05
  %v559 = vadd.f32 %v551, 1e-05
  %v560 = vadd.f32 %v552, 1e-05
  %v561 = vadd.f32 %v553, 1e-05
  %v562 = vadd.f32 %v554, 1e-05
  %v563 = vadd.f32 %v555, 1e-05
  %v564 = vadd.f32 %v556, 1e-05
  %v565 = vrsqrt.pop %v557
  %v566 = vrsqrt.pop %v558
  %v567 = vrsqrt.pop %v559
  %v568 = vrsqrt.pop %v560
  %v569 = vrsqrt.pop %v561
  %v570 = vrsqrt.pop %v562
  %v571 = vrsqrt.pop %v563
  %v572 = vrsqrt.pop %v564
  %v573 = vmul.f32 %v509, %v565
  %v574 = vmul.f32 %v510, %v566
  %v575 = vmul.f32 %v511, %v567
  %v576 = vmul.f32 %v512, %v568
  %v577 = vmul.f32 %v513, %v569
  %v578 = vmul.f32 %v514, %v570
  %v579 = vmul.f32 %v515, %v571
  %v580 = vmul.f32 %v516, %v572
  %v581 = vld [vmem:[%s2] sm:$0xff]
  %v582 = vld [vmem:[%s2 + $0x8] sm:$0xff]
  %v583 = vld [vmem:[%s2 + $0x10] sm:$0xff]
  %v584 = vld [vmem:[%s2 + $0x18] sm:$0xff]
  %v585 = vld [vmem:[%s2 + $0x20] sm:$0xff]
  %v586 = vld [vmem:[%s2 + $0x28] sm:$0xff]
  %v587 = vld [vmem:[%s2 + $0x30] sm:$0xff]
  %v588 = vld [vmem:[%s2 + $0x38] sm:$0xff]
  %590 = vset.pattern.permute.xlu0 0
  %591 = vperm.xlu0 %590, %v581
  %v592 = vpop.permute.xlu0 %591
  %595 = vset.pattern.permute.xlu0 0
  %596 = vperm.xlu0 %595, %v582
  %v597 = vpop.permute.xlu0 %596
  %600 = vset.pattern.permute.xlu0 0
  %601 = vperm.xlu0 %600, %v583
  %v602 = vpop.permute.xlu0 %601
  %605 = vset.pattern.permute.xlu0 0
  %606 = vperm.xlu0 %605, %v584
  %v607 = vpop.permute.xlu0 %606
  %610 = vset.pattern.permute.xlu0 0
  %611 = vperm.xlu0 %610, %v585
  %v612 = vpop.permute.xlu0 %611
  %615 = vset.pattern.permute.xlu0 0
  %616 = vperm.xlu0 %615, %v586
  %v617 = vpop.permute.xlu0 %616
  %620 = vset.pattern.permute.xlu0 0
  %621 = vperm.xlu0 %620, %v587
  %v622 = vpop.permute.xlu0 %621
  %625 = vset.pattern.permute.xlu0 0
  %626 = vperm.xlu0 %625, %v588
  %v627 = vpop.permute.xlu0 %626
  %v629 = vmul.f32 %v573, %v592
  %v630 = vmul.f32 %v574, %v597
  %v631 = vmul.f32 %v575, %v602
  %v632 = vmul.f32 %v576, %v607
  %v633 = vmul.f32 %v577, %v612
  %v634 = vmul.f32 %v578, %v617
  %v635 = vmul.f32 %v579, %v622
  %v636 = vmul.f32 %v580, %v627
  %637 = vset.pattern.permute.xlu0 1
  %638 = vperm.xlu0 %637, %v581
  %v639 = vpop.permute.xlu0 %638
  %641 = vset.pattern.permute.xlu0 1
  %642 = vperm.xlu0 %641, %v582
  %v643 = vpop.permute.xlu0 %642
  %645 = vset.pattern.permute.xlu0 1
  %646 = vperm.xlu0 %645, %v583
  %v647 = vpop.permute.xlu0 %646
  %649 = vset.pattern.permute.xlu0 1
  %650 = vperm.xlu0 %649, %v584
  %v651 = vpop.permute.xlu0 %650
  %653 = vset.pattern.permute.xlu0 1
  %654 = vperm.xlu0 %653, %v585
  %v655 = vpop.permute.xlu0 %654
  %657 = vset.pattern.permute.xlu0 1
  %658 = vperm.xlu0 %657, %v586
  %v659 = vpop.permute.xlu0 %658
  %661 = vset.pattern.permute.xlu0 1
  %662 = vperm.xlu0 %661, %v587
  %v663 = vpop.permute.xlu0 %662
  %665 = vset.pattern.permute.xlu0 1
  %666 = vperm.xlu0 %665, %v588
  %v667 = vpop.permute.xlu0 %666
  %v669 = vadd.f32 %v629, %v639
  %v670 = vadd.f32 %v630, %v643
  %v671 = vadd.f32 %v631, %v647
  %v672 = vadd.f32 %v632, %v651
  %v673 = vadd.f32 %v633, %v655
  %v674 = vadd.f32 %v634, %v659
  %v675 = vadd.f32 %v635, %v663
  %v676 = vadd.f32 %v636, %v667
  %vm677 = vcmp.ge.f32.partialorder %v669, 0.0
  %vm678 = vcmp.ge.f32.partialorder %v670, 0.0
  %vm679 = vcmp.ge.f32.partialorder %v671, 0.0
  %vm680 = vcmp.ge.f32.partialorder %v672, 0.0
  %vm681 = vcmp.ge.f32.partialorder %v673, 0.0
  %vm682 = vcmp.ge.f32.partialorder %v674, 0.0
  %vm683 = vcmp.ge.f32.partialorder %v675, 0.0
  %vm684 = vcmp.ge.f32.partialorder %v676, 0.0
  %685 = vset.pattern.permute.xlu0 2
  %686 = vperm.xlu0 %685, %v581
  %v687 = vpop.permute.xlu0 %686
  %689 = vset.pattern.permute.xlu0 2
  %690 = vperm.xlu0 %689, %v582
  %v691 = vpop.permute.xlu0 %690
  %693 = vset.pattern.permute.xlu0 2
  %694 = vperm.xlu0 %693, %v583
  %v695 = vpop.permute.xlu0 %694
  %697 = vset.pattern.permute.xlu0 2
  %698 = vperm.xlu0 %697, %v584
  %v699 = vpop.permute.xlu0 %698
  %701 = vset.pattern.permute.xlu0 2
  %702 = vperm.xlu0 %701, %v585
  %v703 = vpop.permute.xlu0 %702
  %705 = vset.pattern.permute.xlu0 2
  %706 = vperm.xlu0 %705, %v586
  %v707 = vpop.permute.xlu0 %706
  %709 = vset.pattern.permute.xlu0 2
  %710 = vperm.xlu0 %709, %v587
  %v711 = vpop.permute.xlu0 %710
  %713 = vset.pattern.permute.xlu0 2
  %714 = vperm.xlu0 %713, %v588
  %v715 = vpop.permute.xlu0 %714
  %v717 = vmul.f32 %v687, %v669
  %v718 = vmul.f32 %v691, %v670
  %v719 = vmul.f32 %v695, %v671
  %v720 = vmul.f32 %v699, %v672
  %v721 = vmul.f32 %v703, %v673
  %v722 = vmul.f32 %v707, %v674
  %v723 = vmul.f32 %v711, %v675
  %v724 = vmul.f32 %v715, %v676
  %v725 = vsel %vm677, %v669, %v717
  %v726 = vsel %vm678, %v670, %v718
  %v727 = vsel %vm679, %v671, %v719
  %v728 = vsel %vm680, %v672, %v720
  %v729 = vsel %vm681, %v673, %v721
  %v730 = vsel %vm682, %v674, %v722
  %v731 = vsel %vm683, %v675, %v723
  %v732 = vsel %vm684, %v676, %v724
  %v733 = vld [vmem:[%s3] sm:$0xff]
  %v734 = vld [vmem:[%s3 + $0x8] sm:$0xff]
  %v735 = vld [vmem:[%s3 + $0x10] sm:$0xff]
  %v736 = vld [vmem:[%s3 + $0x18] sm:$0xff]
  %v737 = vld [vmem:[%s4] sm:$0x1]
  %v739 = vlaneseq
  %v740 = vshrl.u32 %v739, 7
  %v741 = vsub.s32 0, %v740
  %v742 = vrot.slane %v737, %v741
  %v745 = vsel %vm475, %v725, 0
  %v748 = vsel %vm475, %v726, 0
  %v751 = vsel %vm475, %v727, 0
  %v754 = vsel %vm475, %v728, 0
  %v757 = vsel %vm475, %v729, 0
  %v760 = vsel %vm475, %v730, 0
  %v763 = vsel %vm475, %v731, 0
  %v766 = vsel %vm475, %v732, 0
  %768 = vmatprep.subr.mxu0 0.0
  %769 = vmatpush1.msra.mxu0 0.0
  %770 = vmatprep.subr.mxu0 0.0
  %771 = vmatpush1.msra.mxu0 0.0
  %772 = vmatprep.subr.mxu0 0.0
  %773 = vmatpush1.msra.mxu0 0.0
  %774 = vmatprep.subr.mxu0 0.0
  %775 = vmatpush1.msra.mxu0 0.0
  %776 = vmatprep.subr.mxu0 0.0
  %777 = vmatpush1.msra.mxu0 0.0
  %778 = vmatprep.subr.mxu0 0.0
  %779 = vmatpush1.msra.mxu0 0.0
  %780 = vmatprep.subr.mxu0 0.0
  %781 = vmatpush1.msra.mxu0 0.0
  %782 = vmatprep.subr.mxu0 0.0
  %783 = vmatpush1.msra.mxu0 0.0
  %784 = vmatprep.subr.mxu0 0.0
  %785 = vmatpush1.msra.mxu0 0.0
  %786 = vmatprep.subr.mxu0 0.0
  %787 = vmatpush1.msra.mxu0 0.0
  %788 = vmatprep.subr.mxu0 0.0
  %789 = vmatpush1.msra.mxu0 0.0
  %790 = vmatprep.subr.mxu0 0.0
  %791 = vmatpush1.msra.mxu0 0.0
  %792 = vmatprep.subr.mxu0 0.0
  %793 = vmatpush1.msra.mxu0 %v736
  %794 = vmatprep.subr.mxu0 0.0
  %795 = vmatpush1.msra.mxu0 %v735
  %796 = vmatprep.subr.mxu0 0.0
  %797 = vmatpush1.msra.mxu0 %v734
  %798 = vmatprep.subr.mxu0 0.0
  %799 = vmatpush1.msra.mxu0 %v733
  %800 = vmatprep.subr.mxu0 0.0
  %801 = vmatpush2.msra.mxu0 0.0
  %802 = vmatprep.subr.mxu0 0.0
  %803 = vmatpush2.msra.mxu0 0.0
  %804 = vmatprep.subr.mxu0 0.0
  %805 = vmatpush2.msra.mxu0 0.0
  %806 = vmatprep.subr.mxu0 0.0
  %807 = vmatpush2.msra.mxu0 0.0
  %808 = vmatprep.subr.mxu0 0.0
  %809 = vmatpush2.msra.mxu0 0.0
  %810 = vmatprep.subr.mxu0 0.0
  %811 = vmatpush2.msra.mxu0 0.0
  %812 = vmatprep.subr.mxu0 0.0
  %813 = vmatpush2.msra.mxu0 0.0
  %814 = vmatprep.subr.mxu0 0.0
  %815 = vmatpush2.msra.mxu0 0.0
  %816 = vmatprep.subr.mxu0 0.0
  %817 = vmatpush2.msra.mxu0 0.0
  %818 = vmatprep.subr.mxu0 0.0
  %819 = vmatpush2.msra.mxu0 0.0
  %820 = vmatprep.subr.mxu0 0.0
  %821 = vmatpush2.msra.mxu0 0.0
  %822 = vmatprep.subr.mxu0 0.0
  %823 = vmatpush2.msra.mxu0 0.0
  %824 = vmatprep.subr.mxu0 0.0
  %825 = vmatpush2.msra.mxu0 0.0
  %826 = vmatprep.subr.mxu0 0.0
  %827 = vmatpush2.msra.mxu0 0.0
  %828 = vmatprep.subr.mxu0 0.0
  %829 = vmatpush2.msra.mxu0 0.0
  %830 = vmatprep.subr.mxu0 0.0
  %831 = vmatpush2.msra.mxu0 0.0
  %832 = vmatprep.mubr.f32.mxu0 0.0
  %833 = vmatmul.mubr.f32.gmra.mxu0 %v745
  %v834 = vpop.f32.mrf.mxu0
  %v835 = vadd.f32 %v742, %v834
  %v836 = vpop.f32.mrf.mxu0
  %837 = vmatprep.mubr.f32.mxu0 0.0
  %838 = vmatmul.mubr.f32.gmra.mxu0 %v748
  %v839 = vpop.f32.mrf.mxu0
  %v840 = vadd.f32 %v742, %v839
  %v841 = vpop.f32.mrf.mxu0
  %842 = vmatprep.mubr.f32.mxu0 0.0
  %843 = vmatmul.mubr.f32.gmra.mxu0 %v751
  %v844 = vpop.f32.mrf.mxu0
  %v845 = vadd.f32 %v742, %v844
  %v846 = vpop.f32.mrf.mxu0
  %847 = vmatprep.mubr.f32.mxu0 0.0
  %848 = vmatmul.mubr.f32.gmra.mxu0 %v754
  %v849 = vpop.f32.mrf.mxu0
  %v850 = vadd.f32 %v742, %v849
  %v851 = vpop.f32.mrf.mxu0
  %852 = vmatprep.mubr.f32.mxu0 0.0
  %853 = vmatmul.mubr.f32.gmra.mxu0 %v757
  %v854 = vpop.f32.mrf.mxu0
  %v855 = vadd.f32 %v742, %v854
  %v856 = vpop.f32.mrf.mxu0
  %857 = vmatprep.mubr.f32.mxu0 0.0
  %858 = vmatmul.mubr.f32.gmra.mxu0 %v760
  %v859 = vpop.f32.mrf.mxu0
  %v860 = vadd.f32 %v742, %v859
  %v861 = vpop.f32.mrf.mxu0
  %862 = vmatprep.mubr.f32.mxu0 0.0
  %863 = vmatmul.mubr.f32.gmra.mxu0 %v763
  %v864 = vpop.f32.mrf.mxu0
  %v865 = vadd.f32 %v742, %v864
  %v866 = vpop.f32.mrf.mxu0
  %867 = vmatprep.mubr.f32.mxu0 0.0
  %868 = vmatmul.mubr.f32.gmra.mxu0 %v766
  %v869 = vpop.f32.mrf.mxu0
  %v870 = vadd.f32 %v742, %v869
  %v871 = vpop.f32.mrf.mxu0
  %872 = vdwg.mxu0
  %v873 = vld [vmem:[%s5] sm:$0xff]
  %v874 = vld [vmem:[%s5 + $0x8] sm:$0xff]
  %v875 = vld [vmem:[%s5 + $0x10] sm:$0xff]
  %v876 = vld [vmem:[%s5 + $0x18] sm:$0xff]
  %v877 = vld [vmem:[%s5 + $0x20] sm:$0xff]
  %v878 = vld [vmem:[%s5 + $0x28] sm:$0xff]
  %v879 = vld [vmem:[%s5 + $0x30] sm:$0xff]
  %v880 = vld [vmem:[%s5 + $0x38] sm:$0xff]
  %v881 = vmul.f32 %v873, %v835
  %v882 = vmul.f32 %v874, %v840
  %v883 = vmul.f32 %v875, %v845
  %v884 = vmul.f32 %v876, %v850
  %v885 = vmul.f32 %v877, %v855
  %v886 = vmul.f32 %v878, %v860
  %v887 = vmul.f32 %v879, %v865
  %v888 = vmul.f32 %v880, %v870
  %897 = vrot.lane.b32.xlu0 %v835, 64
  %v898 = vpop.permute.xlu0 %897
  %899 = vrot.lane.b32.xlu0 %v840, 64
  %v900 = vpop.permute.xlu0 %899
  %901 = vrot.lane.b32.xlu0 %v845, 64
  %v902 = vpop.permute.xlu0 %901
  %903 = vrot.lane.b32.xlu0 %v850, 64
  %v904 = vpop.permute.xlu0 %903
  %905 = vrot.lane.b32.xlu0 %v855, 64
  %v906 = vpop.permute.xlu0 %905
  %907 = vrot.lane.b32.xlu0 %v860, 64
  %v908 = vpop.permute.xlu0 %907
  %909 = vrot.lane.b32.xlu0 %v865, 64
  %v910 = vpop.permute.xlu0 %909
  %911 = vrot.lane.b32.xlu0 %v870, 64
  %v912 = vpop.permute.xlu0 %911
  %v921 = vadd.f32 %v881, %v898
  %v922 = vadd.f32 %v882, %v900
  %v923 = vadd.f32 %v883, %v902
  %v924 = vadd.f32 %v884, %v904
  %v925 = vadd.f32 %v885, %v906
  %v926 = vadd.f32 %v886, %v908
  %v927 = vadd.f32 %v887, %v910
  %v928 = vadd.f32 %v888, %v912
  %929 = vst.msk [vmem:[%s6] sm:$0xff] %vm135, %v921
  %930 = vst.msk [vmem:[%s6 + $0x8] sm:$0xff] %vm135, %v922
  %931 = vst.msk [vmem:[%s6 + $0x10] sm:$0xff] %vm135, %v923
  %932 = vst.msk [vmem:[%s6 + $0x18] sm:$0xff] %vm135, %v924
  %933 = vst.msk [vmem:[%s6 + $0x20] sm:$0xff] %vm135, %v925
  %934 = vst.msk [vmem:[%s6 + $0x28] sm:$0xff] %vm135, %v926
  %935 = vst.msk [vmem:[%s6 + $0x30] sm:$0xff] %vm135, %v927
  %936 = vst.msk [vmem:[%s6 + $0x38] sm:$0xff] %vm135, %v928
  %v937 = vld [vmem:[%s1] sm:$0xff]
  %v938 = vld [vmem:[%s1 + $0x8] sm:$0xff]
  %v939 = vld [vmem:[%s1 + $0x10] sm:$0xff]
  %v940 = vld [vmem:[%s1 + $0x18] sm:$0xff]
  %v941 = vld [vmem:[%s1 + $0x20] sm:$0xff]
  %v942 = vld [vmem:[%s1 + $0x28] sm:$0xff]
  %v943 = vld [vmem:[%s1 + $0x30] sm:$0xff]
  %v944 = vld [vmem:[%s1 + $0x38] sm:$0xff]
  %v945 = vld [vmem:[%s1 + $0x40] sm:$0xff]
  %v946 = vld [vmem:[%s1 + $0x48] sm:$0xff]
  %v947 = vld [vmem:[%s1 + $0x50] sm:$0xff]
  %v948 = vld [vmem:[%s1 + $0x58] sm:$0xff]
  %v949 = vld [vmem:[%s1 + $0x60] sm:$0xff]
  %v950 = vld [vmem:[%s1 + $0x68] sm:$0xff]
  %v951 = vld [vmem:[%s1 + $0x70] sm:$0xff]
  %v952 = vld [vmem:[%s1 + $0x78] sm:$0xff]
  %v953 = vld [vmem:[%s1 + $0x80] sm:$0xff]
  %v954 = vld [vmem:[%s1 + $0x88] sm:$0xff]
  %v955 = vld [vmem:[%s1 + $0x90] sm:$0xff]
  %v956 = vld [vmem:[%s1 + $0x98] sm:$0xff]
  %v957 = vld [vmem:[%s1 + $0xa0] sm:$0xff]
  %v958 = vld [vmem:[%s1 + $0xa8] sm:$0xff]
  %v959 = vld [vmem:[%s1 + $0xb0] sm:$0xff]
  %v960 = vld [vmem:[%s1 + $0xb8] sm:$0xff]
  %v961 = vld [vmem:[%s1 + $0xc0] sm:$0xff]
  %v962 = vld [vmem:[%s1 + $0xc8] sm:$0xff]
  %v963 = vld [vmem:[%s1 + $0xd0] sm:$0xff]
  %v964 = vld [vmem:[%s1 + $0xd8] sm:$0xff]
  %v965 = vld [vmem:[%s1 + $0xe0] sm:$0xff]
  %v966 = vld [vmem:[%s1 + $0xe8] sm:$0xff]
  %v967 = vld [vmem:[%s1 + $0xf0] sm:$0xff]
  %v968 = vld [vmem:[%s1 + $0xf8] sm:$0xff]
  %v969 = vld [vmem:[%s1 + $0x100] sm:$0xff]
  %v970 = vld [vmem:[%s1 + $0x108] sm:$0xff]
  %v971 = vld [vmem:[%s1 + $0x110] sm:$0xff]
  %v972 = vld [vmem:[%s1 + $0x118] sm:$0xff]
  %v973 = vld [vmem:[%s1 + $0x120] sm:$0xff]
  %v974 = vld [vmem:[%s1 + $0x128] sm:$0xff]
  %v975 = vld [vmem:[%s1 + $0x130] sm:$0xff]
  %v976 = vld [vmem:[%s1 + $0x138] sm:$0xff]
  %s977 = scalar_lea.vmem %s0, 576
  %v978 = vld [vmem:[%s977] sm:$0xff]
  %v979 = vld [vmem:[%s977 + $0x8] sm:$0xff]
  %v980 = vld [vmem:[%s977 + $0x10] sm:$0xff]
  %v981 = vld [vmem:[%s977 + $0x18] sm:$0xff]
  %v982 = vld [vmem:[%s977 + $0x20] sm:$0xff]
  %v983 = vld [vmem:[%s977 + $0x28] sm:$0xff]
  %v984 = vld [vmem:[%s977 + $0x30] sm:$0xff]
  %v985 = vld [vmem:[%s977 + $0x38] sm:$0xff]
  %v986 = vld [vmem:[%s977 + $0x40] sm:$0xff]
  %v987 = vld [vmem:[%s977 + $0x48] sm:$0xff]
  %v988 = vld [vmem:[%s977 + $0x50] sm:$0xff]
  %v989 = vld [vmem:[%s977 + $0x58] sm:$0xff]
  %v990 = vld [vmem:[%s977 + $0x60] sm:$0xff]
  %v991 = vld [vmem:[%s977 + $0x68] sm:$0xff]
  %v992 = vld [vmem:[%s977 + $0x70] sm:$0xff]
  %v993 = vld [vmem:[%s977 + $0x78] sm:$0xff]
  %v994 = vld [vmem:[%s977 + $0x80] sm:$0xff]
  %v995 = vld [vmem:[%s977 + $0x88] sm:$0xff]
  %v996 = vld [vmem:[%s977 + $0x90] sm:$0xff]
  %v997 = vld [vmem:[%s977 + $0x98] sm:$0xff]
  %v998 = vld [vmem:[%s977 + $0xa0] sm:$0xff]
  %v999 = vld [vmem:[%s977 + $0xa8] sm:$0xff]
  %v1000 = vld [vmem:[%s977 + $0xb0] sm:$0xff]
  %v1001 = vld [vmem:[%s977 + $0xb8] sm:$0xff]
  %v1002 = vld [vmem:[%s977 + $0xc0] sm:$0xff]
  %v1003 = vld [vmem:[%s977 + $0xc8] sm:$0xff]
  %v1004 = vld [vmem:[%s977 + $0xd0] sm:$0xff]
  %v1005 = vld [vmem:[%s977 + $0xd8] sm:$0xff]
  %v1006 = vld [vmem:[%s977 + $0xe0] sm:$0xff]
  %v1007 = vld [vmem:[%s977 + $0xe8] sm:$0xff]
  %v1008 = vld [vmem:[%s977 + $0xf0] sm:$0xff]
  %v1009 = vld [vmem:[%s977 + $0xf8] sm:$0xff]
  %v1010 = vld [vmem:[%s977 + $0x100] sm:$0xff]
  %v1011 = vld [vmem:[%s977 + $0x108] sm:$0xff]
  %v1012 = vld [vmem:[%s977 + $0x110] sm:$0xff]
  %v1013 = vld [vmem:[%s977 + $0x118] sm:$0xff]
  %v1014 = vld [vmem:[%s977 + $0x120] sm:$0xff]
  %v1015 = vld [vmem:[%s977 + $0x128] sm:$0xff]
  %v1016 = vld [vmem:[%s977 + $0x130] sm:$0xff]
  %v1017 = vld [vmem:[%s977 + $0x138] sm:$0xff]
  %v1018 = vld [vmem:[%s977 + $0x140] sm:$0xff]
  %v1019 = vld [vmem:[%s977 + $0x148] sm:$0xff]
  %v1020 = vld [vmem:[%s977 + $0x150] sm:$0xff]
  %v1021 = vld [vmem:[%s977 + $0x158] sm:$0xff]
  %v1022 = vld [vmem:[%s977 + $0x160] sm:$0xff]
  %v1023 = vld [vmem:[%s977 + $0x168] sm:$0xff]
  %v1024 = vld [vmem:[%s977 + $0x170] sm:$0xff]
  %v1025 = vld [vmem:[%s977 + $0x178] sm:$0xff]
  %v1026 = vld [vmem:[%s977 + $0x180] sm:$0xff]
  %v1027 = vld [vmem:[%s977 + $0x188] sm:$0xff]
  %v1028 = vld [vmem:[%s977 + $0x190] sm:$0xff]
  %v1029 = vld [vmem:[%s977 + $0x198] sm:$0xff]
  %v1030 = vld [vmem:[%s977 + $0x1a0] sm:$0xff]
  %v1031 = vld [vmem:[%s977 + $0x1a8] sm:$0xff]
  %v1032 = vld [vmem:[%s977 + $0x1b0] sm:$0xff]
  %v1033 = vld [vmem:[%s977 + $0x1b8] sm:$0xff]
  %v1034 = vld [vmem:[%s977 + $0x1c0] sm:$0xff]
  %v1035 = vld [vmem:[%s977 + $0x1c8] sm:$0xff]
  %v1036 = vld [vmem:[%s977 + $0x1d0] sm:$0xff]
  %v1037 = vld [vmem:[%s977 + $0x1d8] sm:$0xff]
  %v1038 = vld [vmem:[%s977 + $0x1e0] sm:$0xff]
  %v1039 = vld [vmem:[%s977 + $0x1e8] sm:$0xff]
  %v1040 = vld [vmem:[%s977 + $0x1f0] sm:$0xff]
  %v1041 = vld [vmem:[%s977 + $0x1f8] sm:$0xff]
  %v1042 = vld [vmem:[%s977 + $0x200] sm:$0xff]
  %v1043 = vld [vmem:[%s977 + $0x208] sm:$0xff]
  %v1044 = vld [vmem:[%s977 + $0x210] sm:$0xff]
  %v1045 = vld [vmem:[%s977 + $0x218] sm:$0xff]
  %v1046 = vld [vmem:[%s977 + $0x220] sm:$0xff]
  %v1047 = vld [vmem:[%s977 + $0x228] sm:$0xff]
  %v1048 = vld [vmem:[%s977 + $0x230] sm:$0xff]
  %v1049 = vld [vmem:[%s977 + $0x238] sm:$0xff]
  %v1051 = vsel %vm135, %v941, 0
  %v1054 = vsel %vm135, %v946, 0
  %v1057 = vsel %vm135, %v951, 0
  %v1060 = vsel %vm135, %v956, 0
  %v1063 = vsel %vm135, %v961, 0
  %v1066 = vsel %vm135, %v966, 0
  %v1069 = vsel %vm135, %v971, 0
  %v1072 = vsel %vm135, %v976, 0
  %1074 = vmatprep.subr.mxu0 0.0
  %1075 = vmatpush1.msra.mxu0 %v993
  %1076 = vmatprep.subr.mxu0 0.0
  %1077 = vmatpush1.msra.mxu0 %v992
  %1078 = vmatprep.subr.mxu0 0.0
  %1079 = vmatpush1.msra.mxu0 %v991
  %1080 = vmatprep.subr.mxu0 0.0
  %1081 = vmatpush1.msra.mxu0 %v990
  %1082 = vmatprep.subr.mxu0 0.0
  %1083 = vmatpush1.msra.mxu0 %v989
  %1084 = vmatprep.subr.mxu0 0.0
  %1085 = vmatpush1.msra.mxu0 %v988
  %1086 = vmatprep.subr.mxu0 0.0
  %1087 = vmatpush1.msra.mxu0 %v987
  %1088 = vmatprep.subr.mxu0 0.0
  %1089 = vmatpush1.msra.mxu0 %v986
  %1090 = vmatprep.subr.mxu0 0.0
  %1091 = vmatpush1.msra.mxu0 %v985
  %1092 = vmatprep.subr.mxu0 0.0
  %1093 = vmatpush1.msra.mxu0 %v984
  %1094 = vmatprep.subr.mxu0 0.0
  %1095 = vmatpush1.msra.mxu0 %v983
  %1096 = vmatprep.subr.mxu0 0.0
  %1097 = vmatpush1.msra.mxu0 %v982
  %1098 = vmatprep.subr.mxu0 0.0
  %1099 = vmatpush1.msra.mxu0 %v981
  %1100 = vmatprep.subr.mxu0 0.0
  %1101 = vmatpush1.msra.mxu0 %v980
  %1102 = vmatprep.subr.mxu0 0.0
  %1103 = vmatpush1.msra.mxu0 %v979
  %1104 = vmatprep.subr.mxu0 0.0
  %1105 = vmatpush1.msra.mxu0 %v978
  %1106 = vmatprep.subr.mxu0 0.0
  %1107 = vmatpush2.msra.mxu0 %v1009
  %1108 = vmatprep.subr.mxu0 0.0
  %1109 = vmatpush2.msra.mxu0 %v1008
  %1110 = vmatprep.subr.mxu0 0.0
  %1111 = vmatpush2.msra.mxu0 %v1007
  %1112 = vmatprep.subr.mxu0 0.0
  %1113 = vmatpush2.msra.mxu0 %v1006
  %1114 = vmatprep.subr.mxu0 0.0
  %1115 = vmatpush2.msra.mxu0 %v1005
  %1116 = vmatprep.subr.mxu0 0.0
  %1117 = vmatpush2.msra.mxu0 %v1004
  %1118 = vmatprep.subr.mxu0 0.0
  %1119 = vmatpush2.msra.mxu0 %v1003
  %1120 = vmatprep.subr.mxu0 0.0
  %1121 = vmatpush2.msra.mxu0 %v1002
  %1122 = vmatprep.subr.mxu0 0.0
  %1123 = vmatpush2.msra.mxu0 %v1001
  %1124 = vmatprep.subr.mxu0 0.0
  %1125 = vmatpush2.msra.mxu0 %v1000
  %1126 = vmatprep.subr.mxu0 0.0
  %1127 = vmatpush2.msra.mxu0 %v999
  %1128 = vmatprep.subr.mxu0 0.0
  %1129 = vmatpush2.msra.mxu0 %v998
  %1130 = vmatprep.subr.mxu0 0.0
  %1131 = vmatpush2.msra.mxu0 %v997
  %1132 = vmatprep.subr.mxu0 0.0
  %1133 = vmatpush2.msra.mxu0 %v996
  %1134 = vmatprep.subr.mxu0 0.0
  %1135 = vmatpush2.msra.mxu0 %v995
  %1136 = vmatprep.subr.mxu0 0.0
  %1137 = vmatpush2.msra.mxu0 %v994
  %1138 = vmatprep.mubr.f32.mxu0 %v938
  %1139 = vmatmul.mubr.f32.gmra.mxu0 %v937
  %v1140 = vpop.f32.mrf.mxu0
  %v1141 = vadd.f32 0.0, %v1140
  %v1142 = vpop.f32.mrf.mxu0
  %1143 = vmatprep.mubr.f32.mxu0 %v943
  %1144 = vmatmul.mubr.f32.gmra.mxu0 %v942
  %v1145 = vpop.f32.mrf.mxu0
  %v1146 = vadd.f32 0.0, %v1145
  %v1147 = vpop.f32.mrf.mxu0
  %1148 = vmatprep.mubr.f32.mxu0 %v948
  %1149 = vmatmul.mubr.f32.gmra.mxu0 %v947
  %v1150 = vpop.f32.mrf.mxu0
  %v1151 = vadd.f32 0.0, %v1150
  %v1152 = vpop.f32.mrf.mxu0
  %1153 = vmatprep.mubr.f32.mxu0 %v953
  %1154 = vmatmul.mubr.f32.gmra.mxu0 %v952
  %v1155 = vpop.f32.mrf.mxu0
  %v1156 = vadd.f32 0.0, %v1155
  %v1157 = vpop.f32.mrf.mxu0
  %1158 = vmatprep.mubr.f32.mxu0 %v958
  %1159 = vmatmul.mubr.f32.gmra.mxu0 %v957
  %v1160 = vpop.f32.mrf.mxu0
  %v1161 = vadd.f32 0.0, %v1160
  %v1162 = vpop.f32.mrf.mxu0
  %1163 = vmatprep.mubr.f32.mxu0 %v963
  %1164 = vmatmul.mubr.f32.gmra.mxu0 %v962
  %v1165 = vpop.f32.mrf.mxu0
  %v1166 = vadd.f32 0.0, %v1165
  %v1167 = vpop.f32.mrf.mxu0
  %1168 = vmatprep.mubr.f32.mxu0 %v968
  %1169 = vmatmul.mubr.f32.gmra.mxu0 %v967
  %v1170 = vpop.f32.mrf.mxu0
  %v1171 = vadd.f32 0.0, %v1170
  %v1172 = vpop.f32.mrf.mxu0
  %1173 = vmatprep.mubr.f32.mxu0 %v973
  %1174 = vmatmul.mubr.f32.gmra.mxu0 %v972
  %v1175 = vpop.f32.mrf.mxu0
  %v1176 = vadd.f32 0.0, %v1175
  %v1177 = vpop.f32.mrf.mxu0
  %1178 = vdwg.mxu0
  %1179 = vmatprep.subr.mxu0 0.0
  %1180 = vmatpush1.msra.mxu0 %v1025
  %1181 = vmatprep.subr.mxu0 0.0
  %1182 = vmatpush1.msra.mxu0 %v1024
  %1183 = vmatprep.subr.mxu0 0.0
  %1184 = vmatpush1.msra.mxu0 %v1023
  %1185 = vmatprep.subr.mxu0 0.0
  %1186 = vmatpush1.msra.mxu0 %v1022
  %1187 = vmatprep.subr.mxu0 0.0
  %1188 = vmatpush1.msra.mxu0 %v1021
  %1189 = vmatprep.subr.mxu0 0.0
  %1190 = vmatpush1.msra.mxu0 %v1020
  %1191 = vmatprep.subr.mxu0 0.0
  %1192 = vmatpush1.msra.mxu0 %v1019
  %1193 = vmatprep.subr.mxu0 0.0
  %1194 = vmatpush1.msra.mxu0 %v1018
  %1195 = vmatprep.subr.mxu0 0.0
  %1196 = vmatpush1.msra.mxu0 %v1017
  %1197 = vmatprep.subr.mxu0 0.0
  %1198 = vmatpush1.msra.mxu0 %v1016
  %1199 = vmatprep.subr.mxu0 0.0
  %1200 = vmatpush1.msra.mxu0 %v1015
  %1201 = vmatprep.subr.mxu0 0.0
  %1202 = vmatpush1.msra.mxu0 %v1014
  %1203 = vmatprep.subr.mxu0 0.0
  %1204 = vmatpush1.msra.mxu0 %v1013
  %1205 = vmatprep.subr.mxu0 0.0
  %1206 = vmatpush1.msra.mxu0 %v1012
  %1207 = vmatprep.subr.mxu0 0.0
  %1208 = vmatpush1.msra.mxu0 %v1011
  %1209 = vmatprep.subr.mxu0 0.0
  %1210 = vmatpush1.msra.mxu0 %v1010
  %1211 = vmatprep.subr.mxu0 0.0
  %1212 = vmatpush2.msra.mxu0 %v1041
  %1213 = vmatprep.subr.mxu0 0.0
  %1214 = vmatpush2.msra.mxu0 %v1040
  %1215 = vmatprep.subr.mxu0 0.0
  %1216 = vmatpush2.msra.mxu0 %v1039
  %1217 = vmatprep.subr.mxu0 0.0
  %1218 = vmatpush2.msra.mxu0 %v1038
  %1219 = vmatprep.subr.mxu0 0.0
  %1220 = vmatpush2.msra.mxu0 %v1037
  %1221 = vmatprep.subr.mxu0 0.0
  %1222 = vmatpush2.msra.mxu0 %v1036
  %1223 = vmatprep.subr.mxu0 0.0
  %1224 = vmatpush2.msra.mxu0 %v1035
  %1225 = vmatprep.subr.mxu0 0.0
  %1226 = vmatpush2.msra.mxu0 %v1034
  %1227 = vmatprep.subr.mxu0 0.0
  %1228 = vmatpush2.msra.mxu0 %v1033
  %1229 = vmatprep.subr.mxu0 0.0
  %1230 = vmatpush2.msra.mxu0 %v1032
  %1231 = vmatprep.subr.mxu0 0.0
  %1232 = vmatpush2.msra.mxu0 %v1031
  %1233 = vmatprep.subr.mxu0 0.0
  %1234 = vmatpush2.msra.mxu0 %v1030
  %1235 = vmatprep.subr.mxu0 0.0
  %1236 = vmatpush2.msra.mxu0 %v1029
  %1237 = vmatprep.subr.mxu0 0.0
  %1238 = vmatpush2.msra.mxu0 %v1028
  %1239 = vmatprep.subr.mxu0 0.0
  %1240 = vmatpush2.msra.mxu0 %v1027
  %1241 = vmatprep.subr.mxu0 0.0
  %1242 = vmatpush2.msra.mxu0 %v1026
  %1243 = vmatprep.mubr.f32.mxu0 %v940
  %1244 = vmatmul.mubr.f32.gmra.mxu0 %v939
  %v1245 = vpop.f32.mrf.mxu0
  %v1246 = vadd.f32 %v1141, %v1245
  %v1247 = vpop.f32.mrf.mxu0
  %1248 = vmatprep.mubr.f32.mxu0 %v945
  %1249 = vmatmul.mubr.f32.gmra.mxu0 %v944
  %v1250 = vpop.f32.mrf.mxu0
  %v1251 = vadd.f32 %v1146, %v1250
  %v1252 = vpop.f32.mrf.mxu0
  %1253 = vmatprep.mubr.f32.mxu0 %v950
  %1254 = vmatmul.mubr.f32.gmra.mxu0 %v949
  %v1255 = vpop.f32.mrf.mxu0
  %v1256 = vadd.f32 %v1151, %v1255
  %v1257 = vpop.f32.mrf.mxu0
  %1258 = vmatprep.mubr.f32.mxu0 %v955
  %1259 = vmatmul.mubr.f32.gmra.mxu0 %v954
  %v1260 = vpop.f32.mrf.mxu0
  %v1261 = vadd.f32 %v1156, %v1260
  %v1262 = vpop.f32.mrf.mxu0
  %1263 = vmatprep.mubr.f32.mxu0 %v960
  %1264 = vmatmul.mubr.f32.gmra.mxu0 %v959
  %v1265 = vpop.f32.mrf.mxu0
  %v1266 = vadd.f32 %v1161, %v1265
  %v1267 = vpop.f32.mrf.mxu0
  %1268 = vmatprep.mubr.f32.mxu0 %v965
  %1269 = vmatmul.mubr.f32.gmra.mxu0 %v964
  %v1270 = vpop.f32.mrf.mxu0
  %v1271 = vadd.f32 %v1166, %v1270
  %v1272 = vpop.f32.mrf.mxu0
  %1273 = vmatprep.mubr.f32.mxu0 %v970
  %1274 = vmatmul.mubr.f32.gmra.mxu0 %v969
  %v1275 = vpop.f32.mrf.mxu0
  %v1276 = vadd.f32 %v1171, %v1275
  %v1277 = vpop.f32.mrf.mxu0
  %1278 = vmatprep.mubr.f32.mxu0 %v975
  %1279 = vmatmul.mubr.f32.gmra.mxu0 %v974
  %v1280 = vpop.f32.mrf.mxu0
  %v1281 = vadd.f32 %v1176, %v1280
  %v1282 = vpop.f32.mrf.mxu0
  %1283 = vdwg.mxu0
  %1284 = vmatprep.subr.mxu0 0.0
  %1285 = vmatpush1.msra.mxu0 0.0
  %1286 = vmatprep.subr.mxu0 0.0
  %1287 = vmatpush1.msra.mxu0 0.0
  %1288 = vmatprep.subr.mxu0 0.0
  %1289 = vmatpush1.msra.mxu0 0.0
  %1290 = vmatprep.subr.mxu0 0.0
  %1291 = vmatpush1.msra.mxu0 0.0
  %1292 = vmatprep.subr.mxu0 0.0
  %1293 = vmatpush1.msra.mxu0 0.0
  %1294 = vmatprep.subr.mxu0 0.0
  %1295 = vmatpush1.msra.mxu0 0.0
  %1296 = vmatprep.subr.mxu0 0.0
  %1297 = vmatpush1.msra.mxu0 0.0
  %1298 = vmatprep.subr.mxu0 0.0
  %1299 = vmatpush1.msra.mxu0 0.0
  %1300 = vmatprep.subr.mxu0 0.0
  %1301 = vmatpush1.msra.mxu0 %v1049
  %1302 = vmatprep.subr.mxu0 0.0
  %1303 = vmatpush1.msra.mxu0 %v1048
  %1304 = vmatprep.subr.mxu0 0.0
  %1305 = vmatpush1.msra.mxu0 %v1047
  %1306 = vmatprep.subr.mxu0 0.0
  %1307 = vmatpush1.msra.mxu0 %v1046
  %1308 = vmatprep.subr.mxu0 0.0
  %1309 = vmatpush1.msra.mxu0 %v1045
  %1310 = vmatprep.subr.mxu0 0.0
  %1311 = vmatpush1.msra.mxu0 %v1044
  %1312 = vmatprep.subr.mxu0 0.0
  %1313 = vmatpush1.msra.mxu0 %v1043
  %1314 = vmatprep.subr.mxu0 0.0
  %1315 = vmatpush1.msra.mxu0 %v1042
  %1316 = vmatprep.subr.mxu0 0.0
  %1317 = vmatpush2.msra.mxu0 0.0
  %1318 = vmatprep.subr.mxu0 0.0
  %1319 = vmatpush2.msra.mxu0 0.0
  %1320 = vmatprep.subr.mxu0 0.0
  %1321 = vmatpush2.msra.mxu0 0.0
  %1322 = vmatprep.subr.mxu0 0.0
  %1323 = vmatpush2.msra.mxu0 0.0
  %1324 = vmatprep.subr.mxu0 0.0
  %1325 = vmatpush2.msra.mxu0 0.0
  %1326 = vmatprep.subr.mxu0 0.0
  %1327 = vmatpush2.msra.mxu0 0.0
  %1328 = vmatprep.subr.mxu0 0.0
  %1329 = vmatpush2.msra.mxu0 0.0
  %1330 = vmatprep.subr.mxu0 0.0
  %1331 = vmatpush2.msra.mxu0 0.0
  %1332 = vmatprep.subr.mxu0 0.0
  %1333 = vmatpush2.msra.mxu0 0.0
  %1334 = vmatprep.subr.mxu0 0.0
  %1335 = vmatpush2.msra.mxu0 0.0
  %1336 = vmatprep.subr.mxu0 0.0
  %1337 = vmatpush2.msra.mxu0 0.0
  %1338 = vmatprep.subr.mxu0 0.0
  %1339 = vmatpush2.msra.mxu0 0.0
  %1340 = vmatprep.subr.mxu0 0.0
  %1341 = vmatpush2.msra.mxu0 0.0
  %1342 = vmatprep.subr.mxu0 0.0
  %1343 = vmatpush2.msra.mxu0 0.0
  %1344 = vmatprep.subr.mxu0 0.0
  %1345 = vmatpush2.msra.mxu0 0.0
  %1346 = vmatprep.subr.mxu0 0.0
  %1347 = vmatpush2.msra.mxu0 0.0
  %1348 = vmatprep.mubr.f32.mxu0 0.0
  %1349 = vmatmul.mubr.f32.gmra.mxu0 %v1051
  %v1350 = vpop.f32.mrf.mxu0
  %v1351 = vadd.f32 %v1246, %v1350
  %v1352 = vpop.f32.mrf.mxu0
  %1353 = vmatprep.mubr.f32.mxu0 0.0
  %1354 = vmatmul.mubr.f32.gmra.mxu0 %v1054
  %v1355 = vpop.f32.mrf.mxu0
  %v1356 = vadd.f32 %v1251, %v1355
  %v1357 = vpop.f32.mrf.mxu0
  %1358 = vmatprep.mubr.f32.mxu0 0.0
  %1359 = vmatmul.mubr.f32.gmra.mxu0 %v1057
  %v1360 = vpop.f32.mrf.mxu0
  %v1361 = vadd.f32 %v1256, %v1360
  %v1362 = vpop.f32.mrf.mxu0
  %1363 = vmatprep.mubr.f32.mxu0 0.0
  %1364 = vmatmul.mubr.f32.gmra.mxu0 %v1060
  %v1365 = vpop.f32.mrf.mxu0
  %v1366 = vadd.f32 %v1261, %v1365
  %v1367 = vpop.f32.mrf.mxu0
  %1368 = vmatprep.mubr.f32.mxu0 0.0
  %1369 = vmatmul.mubr.f32.gmra.mxu0 %v1063
  %v1370 = vpop.f32.mrf.mxu0
  %v1371 = vadd.f32 %v1266, %v1370
  %v1372 = vpop.f32.mrf.mxu0
  %1373 = vmatprep.mubr.f32.mxu0 0.0
  %1374 = vmatmul.mubr.f32.gmra.mxu0 %v1066
  %v1375 = vpop.f32.mrf.mxu0
  %v1376 = vadd.f32 %v1271, %v1375
  %v1377 = vpop.f32.mrf.mxu0
  %1378 = vmatprep.mubr.f32.mxu0 0.0
  %1379 = vmatmul.mubr.f32.gmra.mxu0 %v1069
  %v1380 = vpop.f32.mrf.mxu0
  %v1381 = vadd.f32 %v1276, %v1380
  %v1382 = vpop.f32.mrf.mxu0
  %1383 = vmatprep.mubr.f32.mxu0 0.0
  %1384 = vmatmul.mubr.f32.gmra.mxu0 %v1072
  %v1385 = vpop.f32.mrf.mxu0
  %v1386 = vadd.f32 %v1281, %v1385
  %v1387 = vpop.f32.mrf.mxu0
  %1388 = vdwg.mxu0
  %v1389 = vsel %vm475, %v1351, 0.0
  %1390 = vadd.xlane.f32.xlu0 %v1389
  %v1391 = vpop.xlane.xlu0 %1390
  %v1392 = vsel %vm475, %v1356, 0.0
  %1393 = vadd.xlane.f32.xlu0 %v1392
  %v1394 = vpop.xlane.xlu0 %1393
  %v1395 = vsel %vm475, %v1361, 0.0
  %1396 = vadd.xlane.f32.xlu0 %v1395
  %v1397 = vpop.xlane.xlu0 %1396
  %v1398 = vsel %vm475, %v1366, 0.0
  %1399 = vadd.xlane.f32.xlu0 %v1398
  %v1400 = vpop.xlane.xlu0 %1399
  %v1401 = vsel %vm475, %v1371, 0.0
  %1402 = vadd.xlane.f32.xlu0 %v1401
  %v1403 = vpop.xlane.xlu0 %1402
  %v1404 = vsel %vm475, %v1376, 0.0
  %1405 = vadd.xlane.f32.xlu0 %v1404
  %v1406 = vpop.xlane.xlu0 %1405
  %v1407 = vsel %vm475, %v1381, 0.0
  %1408 = vadd.xlane.f32.xlu0 %v1407
  %v1409 = vpop.xlane.xlu0 %1408
  %v1410 = vsel %vm475, %v1386, 0.0
  %1411 = vadd.xlane.f32.xlu0 %v1410
  %v1412 = vpop.xlane.xlu0 %1411
  %v1413 = vmul.f32 %v1391, %v500
  %v1414 = vmul.f32 %v1394, %v500
  %v1415 = vmul.f32 %v1397, %v500
  %v1416 = vmul.f32 %v1400, %v500
  %v1417 = vmul.f32 %v1403, %v500
  %v1418 = vmul.f32 %v1406, %v500
  %v1419 = vmul.f32 %v1409, %v500
  %v1420 = vmul.f32 %v1412, %v500
  %v1421 = vsub.f32 %v1351, %v1413
  %v1422 = vsub.f32 %v1356, %v1414
  %v1423 = vsub.f32 %v1361, %v1415
  %v1424 = vsub.f32 %v1366, %v1416
  %v1425 = vsub.f32 %v1371, %v1417
  %v1426 = vsub.f32 %v1376, %v1418
  %v1427 = vsub.f32 %v1381, %v1419
  %v1428 = vsub.f32 %v1386, %v1420
  %v1429 = vmul.f32 %v1421, %v1421
  %v1430 = vmul.f32 %v1422, %v1422
  %v1431 = vmul.f32 %v1423, %v1423
  %v1432 = vmul.f32 %v1424, %v1424
  %v1433 = vmul.f32 %v1425, %v1425
  %v1434 = vmul.f32 %v1426, %v1426
  %v1435 = vmul.f32 %v1427, %v1427
  %v1436 = vmul.f32 %v1428, %v1428
  %v1437 = vsel %vm475, %v1429, 0.0
  %1438 = vadd.xlane.f32.xlu0 %v1437
  %v1439 = vpop.xlane.xlu0 %1438
  %v1440 = vsel %vm475, %v1430, 0.0
  %1441 = vadd.xlane.f32.xlu0 %v1440
  %v1442 = vpop.xlane.xlu0 %1441
  %v1443 = vsel %vm475, %v1431, 0.0
  %1444 = vadd.xlane.f32.xlu0 %v1443
  %v1445 = vpop.xlane.xlu0 %1444
  %v1446 = vsel %vm475, %v1432, 0.0
  %1447 = vadd.xlane.f32.xlu0 %v1446
  %v1448 = vpop.xlane.xlu0 %1447
  %v1449 = vsel %vm475, %v1433, 0.0
  %1450 = vadd.xlane.f32.xlu0 %v1449
  %v1451 = vpop.xlane.xlu0 %1450
  %v1452 = vsel %vm475, %v1434, 0.0
  %1453 = vadd.xlane.f32.xlu0 %v1452
  %v1454 = vpop.xlane.xlu0 %1453
  %v1455 = vsel %vm475, %v1435, 0.0
  %1456 = vadd.xlane.f32.xlu0 %v1455
  %v1457 = vpop.xlane.xlu0 %1456
  %v1458 = vsel %vm475, %v1436, 0.0
  %1459 = vadd.xlane.f32.xlu0 %v1458
  %v1460 = vpop.xlane.xlu0 %1459
  %v1461 = vmul.f32 %v1439, %v500
  %v1462 = vmul.f32 %v1442, %v500
  %v1463 = vmul.f32 %v1445, %v500
  %v1464 = vmul.f32 %v1448, %v500
  %v1465 = vmul.f32 %v1451, %v500
  %v1466 = vmul.f32 %v1454, %v500
  %v1467 = vmul.f32 %v1457, %v500
  %v1468 = vmul.f32 %v1460, %v500
  %v1469 = vadd.f32 %v1461, 1e-05
  %v1470 = vadd.f32 %v1462, 1e-05
  %v1471 = vadd.f32 %v1463, 1e-05
  %v1472 = vadd.f32 %v1464, 1e-05
  %v1473 = vadd.f32 %v1465, 1e-05
  %v1474 = vadd.f32 %v1466, 1e-05
  %v1475 = vadd.f32 %v1467, 1e-05
  %v1476 = vadd.f32 %v1468, 1e-05
  %v1477 = vrsqrt.pop %v1469
  %v1478 = vrsqrt.pop %v1470
  %v1479 = vrsqrt.pop %v1471
  %v1480 = vrsqrt.pop %v1472
  %v1481 = vrsqrt.pop %v1473
  %v1482 = vrsqrt.pop %v1474
  %v1483 = vrsqrt.pop %v1475
  %v1484 = vrsqrt.pop %v1476
  %v1485 = vmul.f32 %v1421, %v1477
  %v1486 = vmul.f32 %v1422, %v1478
  %v1487 = vmul.f32 %v1423, %v1479
  %v1488 = vmul.f32 %v1424, %v1480
  %v1489 = vmul.f32 %v1425, %v1481
  %v1490 = vmul.f32 %v1426, %v1482
  %v1491 = vmul.f32 %v1427, %v1483
  %v1492 = vmul.f32 %v1428, %v1484
  %v1493 = vld [vmem:[%s2] sm:$0xff]
  %v1494 = vld [vmem:[%s2 + $0x8] sm:$0xff]
  %v1495 = vld [vmem:[%s2 + $0x10] sm:$0xff]
  %v1496 = vld [vmem:[%s2 + $0x18] sm:$0xff]
  %v1497 = vld [vmem:[%s2 + $0x20] sm:$0xff]
  %v1498 = vld [vmem:[%s2 + $0x28] sm:$0xff]
  %v1499 = vld [vmem:[%s2 + $0x30] sm:$0xff]
  %v1500 = vld [vmem:[%s2 + $0x38] sm:$0xff]
  %1502 = vset.pattern.permute.xlu0 0
  %1503 = vperm.xlu0 %1502, %v1493
  %v1504 = vpop.permute.xlu0 %1503
  %1507 = vset.pattern.permute.xlu0 0
  %1508 = vperm.xlu0 %1507, %v1494
  %v1509 = vpop.permute.xlu0 %1508
  %1512 = vset.pattern.permute.xlu0 0
  %1513 = vperm.xlu0 %1512, %v1495
  %v1514 = vpop.permute.xlu0 %1513
  %1517 = vset.pattern.permute.xlu0 0
  %1518 = vperm.xlu0 %1517, %v1496
  %v1519 = vpop.permute.xlu0 %1518
  %1522 = vset.pattern.permute.xlu0 0
  %1523 = vperm.xlu0 %1522, %v1497
  %v1524 = vpop.permute.xlu0 %1523
  %1527 = vset.pattern.permute.xlu0 0
  %1528 = vperm.xlu0 %1527, %v1498
  %v1529 = vpop.permute.xlu0 %1528
  %1532 = vset.pattern.permute.xlu0 0
  %1533 = vperm.xlu0 %1532, %v1499
  %v1534 = vpop.permute.xlu0 %1533
  %1537 = vset.pattern.permute.xlu0 0
  %1538 = vperm.xlu0 %1537, %v1500
  %v1539 = vpop.permute.xlu0 %1538
  %v1541 = vmul.f32 %v1485, %v1504
  %v1542 = vmul.f32 %v1486, %v1509
  %v1543 = vmul.f32 %v1487, %v1514
  %v1544 = vmul.f32 %v1488, %v1519
  %v1545 = vmul.f32 %v1489, %v1524
  %v1546 = vmul.f32 %v1490, %v1529
  %v1547 = vmul.f32 %v1491, %v1534
  %v1548 = vmul.f32 %v1492, %v1539
  %1549 = vset.pattern.permute.xlu0 1
  %1550 = vperm.xlu0 %1549, %v1493
  %v1551 = vpop.permute.xlu0 %1550
  %1553 = vset.pattern.permute.xlu0 1
  %1554 = vperm.xlu0 %1553, %v1494
  %v1555 = vpop.permute.xlu0 %1554
  %1557 = vset.pattern.permute.xlu0 1
  %1558 = vperm.xlu0 %1557, %v1495
  %v1559 = vpop.permute.xlu0 %1558
  %1561 = vset.pattern.permute.xlu0 1
  %1562 = vperm.xlu0 %1561, %v1496
  %v1563 = vpop.permute.xlu0 %1562
  %1565 = vset.pattern.permute.xlu0 1
  %1566 = vperm.xlu0 %1565, %v1497
  %v1567 = vpop.permute.xlu0 %1566
  %1569 = vset.pattern.permute.xlu0 1
  %1570 = vperm.xlu0 %1569, %v1498
  %v1571 = vpop.permute.xlu0 %1570
  %1573 = vset.pattern.permute.xlu0 1
  %1574 = vperm.xlu0 %1573, %v1499
  %v1575 = vpop.permute.xlu0 %1574
  %1577 = vset.pattern.permute.xlu0 1
  %1578 = vperm.xlu0 %1577, %v1500
  %v1579 = vpop.permute.xlu0 %1578
  %v1581 = vadd.f32 %v1541, %v1551
  %v1582 = vadd.f32 %v1542, %v1555
  %v1583 = vadd.f32 %v1543, %v1559
  %v1584 = vadd.f32 %v1544, %v1563
  %v1585 = vadd.f32 %v1545, %v1567
  %v1586 = vadd.f32 %v1546, %v1571
  %v1587 = vadd.f32 %v1547, %v1575
  %v1588 = vadd.f32 %v1548, %v1579
  %vm1589 = vcmp.ge.f32.partialorder %v1581, 0.0
  %vm1590 = vcmp.ge.f32.partialorder %v1582, 0.0
  %vm1591 = vcmp.ge.f32.partialorder %v1583, 0.0
  %vm1592 = vcmp.ge.f32.partialorder %v1584, 0.0
  %vm1593 = vcmp.ge.f32.partialorder %v1585, 0.0
  %vm1594 = vcmp.ge.f32.partialorder %v1586, 0.0
  %vm1595 = vcmp.ge.f32.partialorder %v1587, 0.0
  %vm1596 = vcmp.ge.f32.partialorder %v1588, 0.0
  %1597 = vset.pattern.permute.xlu0 2
  %1598 = vperm.xlu0 %1597, %v1493
  %v1599 = vpop.permute.xlu0 %1598
  %1601 = vset.pattern.permute.xlu0 2
  %1602 = vperm.xlu0 %1601, %v1494
  %v1603 = vpop.permute.xlu0 %1602
  %1605 = vset.pattern.permute.xlu0 2
  %1606 = vperm.xlu0 %1605, %v1495
  %v1607 = vpop.permute.xlu0 %1606
  %1609 = vset.pattern.permute.xlu0 2
  %1610 = vperm.xlu0 %1609, %v1496
  %v1611 = vpop.permute.xlu0 %1610
  %1613 = vset.pattern.permute.xlu0 2
  %1614 = vperm.xlu0 %1613, %v1497
  %v1615 = vpop.permute.xlu0 %1614
  %1617 = vset.pattern.permute.xlu0 2
  %1618 = vperm.xlu0 %1617, %v1498
  %v1619 = vpop.permute.xlu0 %1618
  %1621 = vset.pattern.permute.xlu0 2
  %1622 = vperm.xlu0 %1621, %v1499
  %v1623 = vpop.permute.xlu0 %1622
  %1625 = vset.pattern.permute.xlu0 2
  %1626 = vperm.xlu0 %1625, %v1500
  %v1627 = vpop.permute.xlu0 %1626
  %v1629 = vmul.f32 %v1599, %v1581
  %v1630 = vmul.f32 %v1603, %v1582
  %v1631 = vmul.f32 %v1607, %v1583
  %v1632 = vmul.f32 %v1611, %v1584
  %v1633 = vmul.f32 %v1615, %v1585
  %v1634 = vmul.f32 %v1619, %v1586
  %v1635 = vmul.f32 %v1623, %v1587
  %v1636 = vmul.f32 %v1627, %v1588
  %v1637 = vsel %vm1589, %v1581, %v1629
  %v1638 = vsel %vm1590, %v1582, %v1630
  %v1639 = vsel %vm1591, %v1583, %v1631
  %v1640 = vsel %vm1592, %v1584, %v1632
  %v1641 = vsel %vm1593, %v1585, %v1633
  %v1642 = vsel %vm1594, %v1586, %v1634
  %v1643 = vsel %vm1595, %v1587, %v1635
  %v1644 = vsel %vm1596, %v1588, %v1636
  %v1645 = vld [vmem:[%s3] sm:$0xff]
  %v1646 = vld [vmem:[%s3 + $0x8] sm:$0xff]
  %v1647 = vld [vmem:[%s3 + $0x10] sm:$0xff]
  %v1648 = vld [vmem:[%s3 + $0x18] sm:$0xff]
  %v1649 = vld [vmem:[%s4] sm:$0x1]
  %v1651 = vlaneseq
  %v1652 = vshrl.u32 %v1651, 7
  %v1653 = vsub.s32 0, %v1652
  %v1654 = vrot.slane %v1649, %v1653
  %v1657 = vsel %vm475, %v1637, 0
  %v1660 = vsel %vm475, %v1638, 0
  %v1663 = vsel %vm475, %v1639, 0
  %v1666 = vsel %vm475, %v1640, 0
  %v1669 = vsel %vm475, %v1641, 0
  %v1672 = vsel %vm475, %v1642, 0
  %v1675 = vsel %vm475, %v1643, 0
  %v1678 = vsel %vm475, %v1644, 0
  %1680 = vmatprep.subr.mxu0 0.0
  %1681 = vmatpush1.msra.mxu0 0.0
  %1682 = vmatprep.subr.mxu0 0.0
  %1683 = vmatpush1.msra.mxu0 0.0
  %1684 = vmatprep.subr.mxu0 0.0
  %1685 = vmatpush1.msra.mxu0 0.0
  %1686 = vmatprep.subr.mxu0 0.0
  %1687 = vmatpush1.msra.mxu0 0.0
  %1688 = vmatprep.subr.mxu0 0.0
  %1689 = vmatpush1.msra.mxu0 0.0
  %1690 = vmatprep.subr.mxu0 0.0
  %1691 = vmatpush1.msra.mxu0 0.0
  %1692 = vmatprep.subr.mxu0 0.0
  %1693 = vmatpush1.msra.mxu0 0.0
  %1694 = vmatprep.subr.mxu0 0.0
  %1695 = vmatpush1.msra.mxu0 0.0
  %1696 = vmatprep.subr.mxu0 0.0
  %1697 = vmatpush1.msra.mxu0 0.0
  %1698 = vmatprep.subr.mxu0 0.0
  %1699 = vmatpush1.msra.mxu0 0.0
  %1700 = vmatprep.subr.mxu0 0.0
  %1701 = vmatpush1.msra.mxu0 0.0
  %1702 = vmatprep.subr.mxu0 0.0
  %1703 = vmatpush1.msra.mxu0 0.0
  %1704 = vmatprep.subr.mxu0 0.0
  %1705 = vmatpush1.msra.mxu0 %v1648
  %1706 = vmatprep.subr.mxu0 0.0
  %1707 = vmatpush1.msra.mxu0 %v1647
  %1708 = vmatprep.subr.mxu0 0.0
  %1709 = vmatpush1.msra.mxu0 %v1646
  %1710 = vmatprep.subr.mxu0 0.0
  %1711 = vmatpush1.msra.mxu0 %v1645
  %1712 = vmatprep.subr.mxu0 0.0
  %1713 = vmatpush2.msra.mxu0 0.0
  %1714 = vmatprep.subr.mxu0 0.0
  %1715 = vmatpush2.msra.mxu0 0.0
  %1716 = vmatprep.subr.mxu0 0.0
  %1717 = vmatpush2.msra.mxu0 0.0
  %1718 = vmatprep.subr.mxu0 0.0
  %1719 = vmatpush2.msra.mxu0 0.0
  %1720 = vmatprep.subr.mxu0 0.0
  %1721 = vmatpush2.msra.mxu0 0.0
  %1722 = vmatprep.subr.mxu0 0.0
  %1723 = vmatpush2.msra.mxu0 0.0
  %1724 = vmatprep.subr.mxu0 0.0
  %1725 = vmatpush2.msra.mxu0 0.0
  %1726 = vmatprep.subr.mxu0 0.0
  %1727 = vmatpush2.msra.mxu0 0.0
  %1728 = vmatprep.subr.mxu0 0.0
  %1729 = vmatpush2.msra.mxu0 0.0
  %1730 = vmatprep.subr.mxu0 0.0
  %1731 = vmatpush2.msra.mxu0 0.0
  %1732 = vmatprep.subr.mxu0 0.0
  %1733 = vmatpush2.msra.mxu0 0.0
  %1734 = vmatprep.subr.mxu0 0.0
  %1735 = vmatpush2.msra.mxu0 0.0
  %1736 = vmatprep.subr.mxu0 0.0
  %1737 = vmatpush2.msra.mxu0 0.0
  %1738 = vmatprep.subr.mxu0 0.0
  %1739 = vmatpush2.msra.mxu0 0.0
  %1740 = vmatprep.subr.mxu0 0.0
  %1741 = vmatpush2.msra.mxu0 0.0
  %1742 = vmatprep.subr.mxu0 0.0
  %1743 = vmatpush2.msra.mxu0 0.0
  %1744 = vmatprep.mubr.f32.mxu0 0.0
  %1745 = vmatmul.mubr.f32.gmra.mxu0 %v1657
  %v1746 = vpop.f32.mrf.mxu0
  %v1747 = vadd.f32 %v1654, %v1746
  %v1748 = vpop.f32.mrf.mxu0
  %1749 = vmatprep.mubr.f32.mxu0 0.0
  %1750 = vmatmul.mubr.f32.gmra.mxu0 %v1660
  %v1751 = vpop.f32.mrf.mxu0
  %v1752 = vadd.f32 %v1654, %v1751
  %v1753 = vpop.f32.mrf.mxu0
  %1754 = vmatprep.mubr.f32.mxu0 0.0
  %1755 = vmatmul.mubr.f32.gmra.mxu0 %v1663
  %v1756 = vpop.f32.mrf.mxu0
  %v1757 = vadd.f32 %v1654, %v1756
  %v1758 = vpop.f32.mrf.mxu0
  %1759 = vmatprep.mubr.f32.mxu0 0.0
  %1760 = vmatmul.mubr.f32.gmra.mxu0 %v1666
  %v1761 = vpop.f32.mrf.mxu0
  %v1762 = vadd.f32 %v1654, %v1761
  %v1763 = vpop.f32.mrf.mxu0
  %1764 = vmatprep.mubr.f32.mxu0 0.0
  %1765 = vmatmul.mubr.f32.gmra.mxu0 %v1669
  %v1766 = vpop.f32.mrf.mxu0
  %v1767 = vadd.f32 %v1654, %v1766
  %v1768 = vpop.f32.mrf.mxu0
  %1769 = vmatprep.mubr.f32.mxu0 0.0
  %1770 = vmatmul.mubr.f32.gmra.mxu0 %v1672
  %v1771 = vpop.f32.mrf.mxu0
  %v1772 = vadd.f32 %v1654, %v1771
  %v1773 = vpop.f32.mrf.mxu0
  %1774 = vmatprep.mubr.f32.mxu0 0.0
  %1775 = vmatmul.mubr.f32.gmra.mxu0 %v1675
  %v1776 = vpop.f32.mrf.mxu0
  %v1777 = vadd.f32 %v1654, %v1776
  %v1778 = vpop.f32.mrf.mxu0
  %1779 = vmatprep.mubr.f32.mxu0 0.0
  %1780 = vmatmul.mubr.f32.gmra.mxu0 %v1678
  %v1781 = vpop.f32.mrf.mxu0
  %v1782 = vadd.f32 %v1654, %v1781
  %v1783 = vpop.f32.mrf.mxu0
  %1784 = vdwg.mxu0
  %s1785 = scalar_lea.vmem %s5, 64
  %v1786 = vld [vmem:[%s1785] sm:$0xff]
  %v1787 = vld [vmem:[%s1785 + $0x8] sm:$0xff]
  %v1788 = vld [vmem:[%s1785 + $0x10] sm:$0xff]
  %v1789 = vld [vmem:[%s1785 + $0x18] sm:$0xff]
  %v1790 = vld [vmem:[%s1785 + $0x20] sm:$0xff]
  %v1791 = vld [vmem:[%s1785 + $0x28] sm:$0xff]
  %v1792 = vld [vmem:[%s1785 + $0x30] sm:$0xff]
  %v1793 = vld [vmem:[%s1785 + $0x38] sm:$0xff]
  %v1794 = vmul.f32 %v1786, %v1747
  %v1795 = vmul.f32 %v1787, %v1752
  %v1796 = vmul.f32 %v1788, %v1757
  %v1797 = vmul.f32 %v1789, %v1762
  %v1798 = vmul.f32 %v1790, %v1767
  %v1799 = vmul.f32 %v1791, %v1772
  %v1800 = vmul.f32 %v1792, %v1777
  %v1801 = vmul.f32 %v1793, %v1782
  %1810 = vrot.lane.b32.xlu0 %v1747, 64
  %v1811 = vpop.permute.xlu0 %1810
  %1812 = vrot.lane.b32.xlu0 %v1752, 64
  %v1813 = vpop.permute.xlu0 %1812
  %1814 = vrot.lane.b32.xlu0 %v1757, 64
  %v1815 = vpop.permute.xlu0 %1814
  %1816 = vrot.lane.b32.xlu0 %v1762, 64
  %v1817 = vpop.permute.xlu0 %1816
  %1818 = vrot.lane.b32.xlu0 %v1767, 64
  %v1819 = vpop.permute.xlu0 %1818
  %1820 = vrot.lane.b32.xlu0 %v1772, 64
  %v1821 = vpop.permute.xlu0 %1820
  %1822 = vrot.lane.b32.xlu0 %v1777, 64
  %v1823 = vpop.permute.xlu0 %1822
  %1824 = vrot.lane.b32.xlu0 %v1782, 64
  %v1825 = vpop.permute.xlu0 %1824
  %v1834 = vadd.f32 %v1794, %v1811
  %v1835 = vadd.f32 %v1795, %v1813
  %v1836 = vadd.f32 %v1796, %v1815
  %v1837 = vadd.f32 %v1797, %v1817
  %v1838 = vadd.f32 %v1798, %v1819
  %v1839 = vadd.f32 %v1799, %v1821
  %v1840 = vadd.f32 %v1800, %v1823
  %v1841 = vadd.f32 %v1801, %v1825
  %s1842 = scalar_lea.vmem %s6, 64
  %1843 = vst.msk [vmem:[%s1842] sm:$0xff] %vm135, %v1834
  %1844 = vst.msk [vmem:[%s1842 + $0x8] sm:$0xff] %vm135, %v1835
  %1845 = vst.msk [vmem:[%s1842 + $0x10] sm:$0xff] %vm135, %v1836
  %1846 = vst.msk [vmem:[%s1842 + $0x18] sm:$0xff] %vm135, %v1837
  %1847 = vst.msk [vmem:[%s1842 + $0x20] sm:$0xff] %vm135, %v1838
  %1848 = vst.msk [vmem:[%s1842 + $0x28] sm:$0xff] %vm135, %v1839
  %1849 = vst.msk [vmem:[%s1842 + $0x30] sm:$0xff] %vm135, %v1840
  %1850 = vst.msk [vmem:[%s1842 + $0x38] sm:$0xff] %vm135, %v1841
  // Predicated region
  $region26: #{film2f_forward.1} parent=0 // pred_check
    _
  $region27: #{film2f_forward.1} parent=0 // pred_check_branch
    %1852 = sbr.rel (0) target = $region29
  $region28: #{film2f_forward.1} parent=0 // pred_region
    _
  $region29: #{film2f_forward.1} parent=0 // pred_fallthru
    _
  // Predicated region
  $region30: #{film2f_forward.1} parent=0 // pred_check
    _
  $region31: #{film2f_forward.1} parent=0 // pred_check_branch
    %1854 = sbr.rel (0) target = $region33
  $region32: #{film2f_forward.1} parent=0 // pred_region
    _
  $region33: #{film2f_forward.1} parent=0 // pred_fallthru
    _

</llo_original>
